<compile_context>
chip_gen: v5e
topology: v5e:2x2
jax: 0.10.0
libtpu: 0.0.40
codegen_flags: <defaults>
</compile_context>

<pallas_src>
import functools

import jax
import jax.numpy as jnp
from jax.experimental import pallas as pl
from jax.experimental.pallas import tpu as pltpu

C = 3           # in_channels == out_channels == 3
KH = KW = 3     # 3x3 kernel, stride 1, padding 1 ("SAME")
# Tap order matches OIHW kernel positions: k = (dh+1)*3 + (dw+1) = kh*3 + kw.
_OFFSETS = tuple((dh, dw) for dh in (-1, 0, 1) for dw in (-1, 0, 1))


def _resblock_kernel(x_ref, mask_ref, w1_ref, b1_ref, w2_ref, b2_ref, o_ref, *, W):
    # x_ref   : (1, C, HW)     VMEM f32  -- one image, spatial dims flattened onto lanes
    # mask_ref: (9, 1, HW)     VMEM f32  -- {0,1} border-validity mask per 3x3 tap
    # w*_ref  : (9, C, C, 1)   VMEM f32  -- weights laid out as [tap, c_in, c_out, 1]
    # b*_ref  : (C, 1)         VMEM f32  -- conv biases as a column
    # o_ref   : (1, C, HW)     VMEM
    HW = x_ref.shape[-1]

    x = x_ref[0]                                     # (C, HW) f32, loaded once
    masks = [mask_ref[k] for k in range(KH * KW)]    # 9 arrays of (1, HW)

    def conv3x3_relu(inp, w_ref, b_ref):
        acc = jnp.zeros((C, HW), jnp.float32)
        for k, (dh, dw) in enumerate(_OFFSETS):
            # tap[p] = inp[:, p + dh*W + dw], zero outside the image border.
            s = dh * W + dw
            t = inp                                          # (C, HW)
            if s != 0:
                t = pltpu.roll(t, shift=(-s) % HW, axis=1)   # one lane roll (XLU)
            if dh != 0 or dw != 0:
                t = t * masks[k]                             # zero "SAME" padding (VPU)
            for cin in range(C):
                w_col = w_ref[k, cin]                        # (C_out, 1) weight column
                # (C,1) * (1,HW) -> broadcast FMA over all output channels at once.
                acc = acc + w_col * t[cin:cin + 1, :]
        return jnp.maximum(acc + b_ref[...], 0.0)            # bias + ReLU, (C, HW)

    y1 = conv3x3_relu(x, w1_ref, b1_ref)            # relu(conv1(x) + b1)
    y2 = conv3x3_relu(y1, w2_ref, b2_ref)           # relu(conv2(y1) + b2)
    o_ref[0] = (y2 + x).astype(o_ref.dtype)         # residual add, one lane-dense store


def _border_masks(H, W):
    HW = H * W
    rows = jnp.arange(HW, dtype=jnp.int32) // W
    cols = jnp.arange(HW, dtype=jnp.int32) % W
    ms = []
    for dh, dw in _OFFSETS:
        valid = ((rows + dh >= 0) & (rows + dh < H) &
                 (cols + dw >= 0) & (cols + dw < W))
        ms.append(valid.astype(jnp.float32))
    return jnp.stack(ms, axis=0).reshape(KH * KW, 1, HW)


def _prep_weight(w_oihw):
    # OIHW (C_out, C_in, 3, 3) -> (tap, c_in, c_out, 1) for in-kernel column broadcast.
    w = w_oihw.reshape(C, C, KH * KW)                # (o, i, k)
    return jnp.transpose(w, (2, 1, 0)).reshape(KH * KW, C, C, 1)


@jax.jit
def simple_residual_block(x_nchw, w1, b1, w2, b2):
    """x_nchw: (N, 3, H, W) f32; w*: (3, 3, 3, 3) OIHW; b*: (3,). Returns (N, 3, H, W)."""
    N, Cc, H, W = x_nchw.shape
    assert Cc == C
    HW = H * W
    x = x_nchw.reshape(N, C, HW)                     # free reshape, order unchanged
    masks = _border_masks(H, W)

    out = pl.pallas_call(
        functools.partial(_resblock_kernel, W=W),
        out_shape=jax.ShapeDtypeStruct((N, C, HW), x_nchw.dtype),
        grid_spec=pltpu.PrefetchScalarGridSpec(
            num_scalar_prefetch=0,
            grid=(N,),
            in_specs=[
                pl.BlockSpec((1, C, HW), lambda n: (n, 0, 0)),
                pl.BlockSpec((KH * KW, 1, HW), lambda n: (0, 0, 0)),
                pl.BlockSpec((KH * KW, C, C, 1), lambda n: (0, 0, 0, 0)),
                pl.BlockSpec((C, 1), lambda n: (0, 0)),
                pl.BlockSpec((KH * KW, C, C, 1), lambda n: (0, 0, 0, 0)),
                pl.BlockSpec((C, 1), lambda n: (0, 0)),
            ],
            out_specs=pl.BlockSpec((1, C, HW), lambda n: (n, 0, 0)),
        ),
        compiler_params=pltpu.CompilerParams(
            dimension_semantics=("parallel",)),
    )(x, masks, _prep_weight(w1), b1.reshape(C, 1), _prep_weight(w2), b2.reshape(C, 1))

    return out.reshape(N, C, H, W)


def _reference(x, w1, b1, w2, b2):
    # Pure-JAX reference (same math as the PyTorch module), NCHW / OIHW.
    dn = ('NCHW', 'OIHW', 'NCHW')
    y = jax.lax.conv_general_dilated(x, w1, (1, 1), ((1, 1), (1, 1)), dimension_numbers=dn)
    y = jnp.maximum(y + b1.reshape(1, C, 1, 1), 0.0)
    y = jax.lax.conv_general_dilated(y, w2, (1, 1), ((1, 1), (1, 1)), dimension_numbers=dn)
    return jnp.maximum(y + b2.reshape(1, C, 1, 1), 0.0) + x


if __name__ == "__main__":
    key = jax.random.PRNGKey(0)
    kx, k1, k2, k3, k4 = jax.random.split(key, 5)

    N, H, W = 2, 16, 16
    x = jax.random.normal(kx, (N, C, H, W), dtype=jnp.float32)       # NCHW like PyTorch

    # PyTorch-style init: uniform(-1/sqrt(fan_in), 1/sqrt(fan_in)), OIHW weight layout.
    bound = (C * KH * KW) ** -0.5
    w1 = jax.random.uniform(k1, (C, C, KH, KW), jnp.float32, -bound, bound)
    b1 = jax.random.uniform(k2, (C,), jnp.float32, -bound, bound)
    w2 = jax.random.uniform(k3, (C, C, KH, KW), jnp.float32, -bound, bound)
    b2 = jax.random.uniform(k4, (C,), jnp.float32, -bound, bound)

    out = jax.block_until_ready(simple_residual_block(x, w1, b1, w2, b2))
    ref = jax.block_until_ready(_reference(x, w1, b1, w2, b2))

    assert out.shape == (N, C, H, W)
    assert jnp.allclose(out, ref, atol=1e-5, rtol=1e-5), "mismatch vs JAX reference"
    print("KERNEL_OK")
</pallas_src>

<mosaic_0001>
module attributes {stable_mosaic.version = 11 : i64} {
  func.func @_resblock_kernel(%arg0: i32, %arg1: memref<1x3x256xf32, #tpu.memory_space<vmem>>, %arg2: memref<9x1x256xf32, #tpu.memory_space<vmem>>, %arg3: memref<9x3x3x1xf32, #tpu.memory_space<vmem>>, %arg4: memref<3x1xf32, #tpu.memory_space<vmem>>, %arg5: memref<9x3x3x1xf32, #tpu.memory_space<vmem>>, %arg6: memref<3x1xf32, #tpu.memory_space<vmem>>, %arg7: memref<1x3x256xf32, #tpu.memory_space<vmem>>) attributes {dimension_semantics = [#tpu.dimension_semantics<parallel>], iteration_bounds = array<i64: 2>, scalar_prefetch = 0 : i64, scratch_operands = 0 : i64, tpu.core_type = #tpu.core_type<tc>, window_params = [{transform_indices = @transform_0, window_bounds = array<i64: 1, 3, 256>}, {pipeline_mode = #tpu.pipeline_mode<synchronous>, transform_indices = @transform_1, window_bounds = array<i64: 9, 1, 256>}, {pipeline_mode = #tpu.pipeline_mode<synchronous>, transform_indices = @transform_2, window_bounds = array<i64: 9, 3, 3, 1>}, {pipeline_mode = #tpu.pipeline_mode<synchronous>, transform_indices = @transform_3, window_bounds = array<i64: 3, 1>}, {pipeline_mode = #tpu.pipeline_mode<synchronous>, transform_indices = @transform_4, window_bounds = array<i64: 9, 3, 3, 1>}, {pipeline_mode = #tpu.pipeline_mode<synchronous>, transform_indices = @transform_5, window_bounds = array<i64: 3, 1>}, {transform_indices = @transform_6, window_bounds = array<i64: 1, 3, 256>}]} {
    %c0 = arith.constant 0 : index
    %c0_0 = arith.constant 0 : index
    %c0_1 = arith.constant 0 : index
    %0 = vector.load %arg1[%c0, %c0_0, %c0_1] : memref<1x3x256xf32, #tpu.memory_space<vmem>>, vector<1x3x256xf32>
    %1 = vector.shape_cast %0 : vector<1x3x256xf32> to vector<3x256xf32>
    %c0_2 = arith.constant 0 : index
    %c0_3 = arith.constant 0 : index
    %c0_4 = arith.constant 0 : index
    %2 = vector.load %arg2[%c0_2, %c0_3, %c0_4] : memref<9x1x256xf32, #tpu.memory_space<vmem>>, vector<1x1x256xf32>
    %3 = vector.shape_cast %2 : vector<1x1x256xf32> to vector<1x256xf32>
    %c1 = arith.constant 1 : index
    %c0_5 = arith.constant 0 : index
    %c0_6 = arith.constant 0 : index
    %4 = vector.load %arg2[%c1, %c0_5, %c0_6] : memref<9x1x256xf32, #tpu.memory_space<vmem>>, vector<1x1x256xf32>
    %5 = vector.shape_cast %4 : vector<1x1x256xf32> to vector<1x256xf32>
    %c2 = arith.constant 2 : index
    %c0_7 = arith.constant 0 : index
    %c0_8 = arith.constant 0 : index
    %6 = vector.load %arg2[%c2, %c0_7, %c0_8] : memref<9x1x256xf32, #tpu.memory_space<vmem>>, vector<1x1x256xf32>
    %7 = vector.shape_cast %6 : vector<1x1x256xf32> to vector<1x256xf32>
    %c3 = arith.constant 3 : index
    %c0_9 = arith.constant 0 : index
    %c0_10 = arith.constant 0 : index
    %8 = vector.load %arg2[%c3, %c0_9, %c0_10] : memref<9x1x256xf32, #tpu.memory_space<vmem>>, vector<1x1x256xf32>
    %9 = vector.shape_cast %8 : vector<1x1x256xf32> to vector<1x256xf32>
    %c5 = arith.constant 5 : index
    %c0_11 = arith.constant 0 : index
    %c0_12 = arith.constant 0 : index
    %10 = vector.load %arg2[%c5, %c0_11, %c0_12] : memref<9x1x256xf32, #tpu.memory_space<vmem>>, vector<1x1x256xf32>
    %11 = vector.shape_cast %10 : vector<1x1x256xf32> to vector<1x256xf32>
    %c6 = arith.constant 6 : index
    %c0_13 = arith.constant 0 : index
    %c0_14 = arith.constant 0 : index
    %12 = vector.load %arg2[%c6, %c0_13, %c0_14] : memref<9x1x256xf32, #tpu.memory_space<vmem>>, vector<1x1x256xf32>
    %13 = vector.shape_cast %12 : vector<1x1x256xf32> to vector<1x256xf32>
    %c7 = arith.constant 7 : index
    %c0_15 = arith.constant 0 : index
    %c0_16 = arith.constant 0 : index
    %14 = vector.load %arg2[%c7, %c0_15, %c0_16] : memref<9x1x256xf32, #tpu.memory_space<vmem>>, vector<1x1x256xf32>
    %15 = vector.shape_cast %14 : vector<1x1x256xf32> to vector<1x256xf32>
    %c8 = arith.constant 8 : index
    %c0_17 = arith.constant 0 : index
    %c0_18 = arith.constant 0 : index
    %16 = vector.load %arg2[%c8, %c0_17, %c0_18] : memref<9x1x256xf32, #tpu.memory_space<vmem>>, vector<1x1x256xf32>
    %17 = vector.shape_cast %16 : vector<1x1x256xf32> to vector<1x256xf32>
    %cst = arith.constant 0.000000e+00 : f32
    %18 = vector.broadcast %cst : f32 to vector<3x256xf32>
    %c17_i32 = arith.constant 17 : i32
    %19 = tpu.dynamic_rotate %1 by %c17_i32 dim 1 : vector<3x256xf32>, i32 -> vector<3x256xf32>
    %20 = vector.broadcast %3 : vector<1x256xf32> to vector<3x256xf32>
    %21 = arith.mulf %19, %20 : vector<3x256xf32>
    %c0_19 = arith.constant 0 : index
    %c0_20 = arith.constant 0 : index
    %c0_21 = arith.constant 0 : index
    %c0_22 = arith.constant 0 : index
    %22 = vector.load %arg3[%c0_19, %c0_20, %c0_21, %c0_22] : memref<9x3x3x1xf32, #tpu.memory_space<vmem>>, vector<1x1x3x1xf32>
    %23 = vector.shape_cast %22 : vector<1x1x3x1xf32> to vector<3x1xf32>
    %24 = vector.extract_strided_slice %21 {offsets = [0, 0], sizes = [1, 256], strides = [1, 1]} : vector<3x256xf32> to vector<1x256xf32>
    %25 = vector.broadcast %23 : vector<3x1xf32> to vector<3x256xf32>
    %26 = vector.broadcast %24 : vector<1x256xf32> to vector<3x256xf32>
    %27 = arith.mulf %25, %26 : vector<3x256xf32>
    %28 = arith.addf %18, %27 : vector<3x256xf32>
    %c0_23 = arith.constant 0 : index
    %c1_24 = arith.constant 1 : index
    %c0_25 = arith.constant 0 : index
    %c0_26 = arith.constant 0 : index
    %29 = vector.load %arg3[%c0_23, %c1_24, %c0_25, %c0_26] : memref<9x3x3x1xf32, #tpu.memory_space<vmem>>, vector<1x1x3x1xf32>
    %30 = vector.shape_cast %29 : vector<1x1x3x1xf32> to vector<3x1xf32>
    %31 = vector.extract_strided_slice %21 {offsets = [1, 0], sizes = [1, 256], strides = [1, 1]} : vector<3x256xf32> to vector<1x256xf32>
    %32 = vector.broadcast %30 : vector<3x1xf32> to vector<3x256xf32>
    %33 = vector.broadcast %31 : vector<1x256xf32> to vector<3x256xf32>
    %34 = arith.mulf %32, %33 : vector<3x256xf32>
    %35 = arith.addf %28, %34 : vector<3x256xf32>
    %c0_27 = arith.constant 0 : index
    %c2_28 = arith.constant 2 : index
    %c0_29 = arith.constant 0 : index
    %c0_30 = arith.constant 0 : index
    %36 = vector.load %arg3[%c0_27, %c2_28, %c0_29, %c0_30] : memref<9x3x3x1xf32, #tpu.memory_space<vmem>>, vector<1x1x3x1xf32>
    %37 = vector.shape_cast %36 : vector<1x1x3x1xf32> to vector<3x1xf32>
    %38 = vector.extract_strided_slice %21 {offsets = [2, 0], sizes = [1, 256], strides = [1, 1]} : vector<3x256xf32> to vector<1x256xf32>
    %39 = vector.broadcast %37 : vector<3x1xf32> to vector<3x256xf32>
    %40 = vector.broadcast %38 : vector<1x256xf32> to vector<3x256xf32>
    %41 = arith.mulf %39, %40 : vector<3x256xf32>
    %42 = arith.addf %35, %41 : vector<3x256xf32>
    %c16_i32 = arith.constant 16 : i32
    %43 = tpu.dynamic_rotate %1 by %c16_i32 dim 1 : vector<3x256xf32>, i32 -> vector<3x256xf32>
    %44 = vector.broadcast %5 : vector<1x256xf32> to vector<3x256xf32>
    %45 = arith.mulf %43, %44 : vector<3x256xf32>
    %c1_31 = arith.constant 1 : index
    %c0_32 = arith.constant 0 : index
    %c0_33 = arith.constant 0 : index
    %c0_34 = arith.constant 0 : index
    %46 = vector.load %arg3[%c1_31, %c0_32, %c0_33, %c0_34] : memref<9x3x3x1xf32, #tpu.memory_space<vmem>>, vector<1x1x3x1xf32>
    %47 = vector.shape_cast %46 : vector<1x1x3x1xf32> to vector<3x1xf32>
    %48 = vector.extract_strided_slice %45 {offsets = [0, 0], sizes = [1, 256], strides = [1, 1]} : vector<3x256xf32> to vector<1x256xf32>
    %49 = vector.broadcast %47 : vector<3x1xf32> to vector<3x256xf32>
    %50 = vector.broadcast %48 : vector<1x256xf32> to vector<3x256xf32>
    %51 = arith.mulf %49, %50 : vector<3x256xf32>
    %52 = arith.addf %42, %51 : vector<3x256xf32>
    %c1_35 = arith.constant 1 : index
    %c1_36 = arith.constant 1 : index
    %c0_37 = arith.constant 0 : index
    %c0_38 = arith.constant 0 : index
    %53 = vector.load %arg3[%c1_35, %c1_36, %c0_37, %c0_38] : memref<9x3x3x1xf32, #tpu.memory_space<vmem>>, vector<1x1x3x1xf32>
    %54 = vector.shape_cast %53 : vector<1x1x3x1xf32> to vector<3x1xf32>
    %55 = vector.extract_strided_slice %45 {offsets = [1, 0], sizes = [1, 256], strides = [1, 1]} : vector<3x256xf32> to vector<1x256xf32>
    %56 = vector.broadcast %54 : vector<3x1xf32> to vector<3x256xf32>
    %57 = vector.broadcast %55 : vector<1x256xf32> to vector<3x256xf32>
    %58 = arith.mulf %56, %57 : vector<3x256xf32>
    %59 = arith.addf %52, %58 : vector<3x256xf32>
    %c1_39 = arith.constant 1 : index
    %c2_40 = arith.constant 2 : index
    %c0_41 = arith.constant 0 : index
    %c0_42 = arith.constant 0 : index
    %60 = vector.load %arg3[%c1_39, %c2_40, %c0_41, %c0_42] : memref<9x3x3x1xf32, #tpu.memory_space<vmem>>, vector<1x1x3x1xf32>
    %61 = vector.shape_cast %60 : vector<1x1x3x1xf32> to vector<3x1xf32>
    %62 = vector.extract_strided_slice %45 {offsets = [2, 0], sizes = [1, 256], strides = [1, 1]} : vector<3x256xf32> to vector<1x256xf32>
    %63 = vector.broadcast %61 : vector<3x1xf32> to vector<3x256xf32>
    %64 = vector.broadcast %62 : vector<1x256xf32> to vector<3x256xf32>
    %65 = arith.mulf %63, %64 : vector<3x256xf32>
    %66 = arith.addf %59, %65 : vector<3x256xf32>
    %c15_i32 = arith.constant 15 : i32
    %67 = tpu.dynamic_rotate %1 by %c15_i32 dim 1 : vector<3x256xf32>, i32 -> vector<3x256xf32>
    %68 = vector.broadcast %7 : vector<1x256xf32> to vector<3x256xf32>
    %69 = arith.mulf %67, %68 : vector<3x256xf32>
    %c2_43 = arith.constant 2 : index
    %c0_44 = arith.constant 0 : index
    %c0_45 = arith.constant 0 : index
    %c0_46 = arith.constant 0 : index
    %70 = vector.load %arg3[%c2_43, %c0_44, %c0_45, %c0_46] : memref<9x3x3x1xf32, #tpu.memory_space<vmem>>, vector<1x1x3x1xf32>
    %71 = vector.shape_cast %70 : vector<1x1x3x1xf32> to vector<3x1xf32>
    %72 = vector.extract_strided_slice %69 {offsets = [0, 0], sizes = [1, 256], strides = [1, 1]} : vector<3x256xf32> to vector<1x256xf32>
    %73 = vector.broadcast %71 : vector<3x1xf32> to vector<3x256xf32>
    %74 = vector.broadcast %72 : vector<1x256xf32> to vector<3x256xf32>
    %75 = arith.mulf %73, %74 : vector<3x256xf32>
    %76 = arith.addf %66, %75 : vector<3x256xf32>
    %c2_47 = arith.constant 2 : index
    %c1_48 = arith.constant 1 : index
    %c0_49 = arith.constant 0 : index
    %c0_50 = arith.constant 0 : index
    %77 = vector.load %arg3[%c2_47, %c1_48, %c0_49, %c0_50] : memref<9x3x3x1xf32, #tpu.memory_space<vmem>>, vector<1x1x3x1xf32>
    %78 = vector.shape_cast %77 : vector<1x1x3x1xf32> to vector<3x1xf32>
    %79 = vector.extract_strided_slice %69 {offsets = [1, 0], sizes = [1, 256], strides = [1, 1]} : vector<3x256xf32> to vector<1x256xf32>
    %80 = vector.broadcast %78 : vector<3x1xf32> to vector<3x256xf32>
    %81 = vector.broadcast %79 : vector<1x256xf32> to vector<3x256xf32>
    %82 = arith.mulf %80, %81 : vector<3x256xf32>
    %83 = arith.addf %76, %82 : vector<3x256xf32>
    %c2_51 = arith.constant 2 : index
    %c2_52 = arith.constant 2 : index
    %c0_53 = arith.constant 0 : index
    %c0_54 = arith.constant 0 : index
    %84 = vector.load %arg3[%c2_51, %c2_52, %c0_53, %c0_54] : memref<9x3x3x1xf32, #tpu.memory_space<vmem>>, vector<1x1x3x1xf32>
    %85 = vector.shape_cast %84 : vector<1x1x3x1xf32> to vector<3x1xf32>
    %86 = vector.extract_strided_slice %69 {offsets = [2, 0], sizes = [1, 256], strides = [1, 1]} : vector<3x256xf32> to vector<1x256xf32>
    %87 = vector.broadcast %85 : vector<3x1xf32> to vector<3x256xf32>
    %88 = vector.broadcast %86 : vector<1x256xf32> to vector<3x256xf32>
    %89 = arith.mulf %87, %88 : vector<3x256xf32>
    %90 = arith.addf %83, %89 : vector<3x256xf32>
    %c1_i32 = arith.constant 1 : i32
    %91 = tpu.dynamic_rotate %1 by %c1_i32 dim 1 : vector<3x256xf32>, i32 -> vector<3x256xf32>
    %92 = vector.broadcast %9 : vector<1x256xf32> to vector<3x256xf32>
    %93 = arith.mulf %91, %92 : vector<3x256xf32>
    %c3_55 = arith.constant 3 : index
    %c0_56 = arith.constant 0 : index
    %c0_57 = arith.constant 0 : index
    %c0_58 = arith.constant 0 : index
    %94 = vector.load %arg3[%c3_55, %c0_56, %c0_57, %c0_58] : memref<9x3x3x1xf32, #tpu.memory_space<vmem>>, vector<1x1x3x1xf32>
    %95 = vector.shape_cast %94 : vector<1x1x3x1xf32> to vector<3x1xf32>
    %96 = vector.extract_strided_slice %93 {offsets = [0, 0], sizes = [1, 256], strides = [1, 1]} : vector<3x256xf32> to vector<1x256xf32>
    %97 = vector.broadcast %95 : vector<3x1xf32> to vector<3x256xf32>
    %98 = vector.broadcast %96 : vector<1x256xf32> to vector<3x256xf32>
    %99 = arith.mulf %97, %98 : vector<3x256xf32>
    %100 = arith.addf %90, %99 : vector<3x256xf32>
    %c3_59 = arith.constant 3 : index
    %c1_60 = arith.constant 1 : index
    %c0_61 = arith.constant 0 : index
    %c0_62 = arith.constant 0 : index
    %101 = vector.load %arg3[%c3_59, %c1_60, %c0_61, %c0_62] : memref<9x3x3x1xf32, #tpu.memory_space<vmem>>, vector<1x1x3x1xf32>
    %102 = vector.shape_cast %101 : vector<1x1x3x1xf32> to vector<3x1xf32>
    %103 = vector.extract_strided_slice %93 {offsets = [1, 0], sizes = [1, 256], strides = [1, 1]} : vector<3x256xf32> to vector<1x256xf32>
    %104 = vector.broadcast %102 : vector<3x1xf32> to vector<3x256xf32>
    %105 = vector.broadcast %103 : vector<1x256xf32> to vector<3x256xf32>
    %106 = arith.mulf %104, %105 : vector<3x256xf32>
    %107 = arith.addf %100, %106 : vector<3x256xf32>
    %c3_63 = arith.constant 3 : index
    %c2_64 = arith.constant 2 : index
    %c0_65 = arith.constant 0 : index
    %c0_66 = arith.constant 0 : index
    %108 = vector.load %arg3[%c3_63, %c2_64, %c0_65, %c0_66] : memref<9x3x3x1xf32, #tpu.memory_space<vmem>>, vector<1x1x3x1xf32>
    %109 = vector.shape_cast %108 : vector<1x1x3x1xf32> to vector<3x1xf32>
    %110 = vector.extract_strided_slice %93 {offsets = [2, 0], sizes = [1, 256], strides = [1, 1]} : vector<3x256xf32> to vector<1x256xf32>
    %111 = vector.broadcast %109 : vector<3x1xf32> to vector<3x256xf32>
    %112 = vector.broadcast %110 : vector<1x256xf32> to vector<3x256xf32>
    %113 = arith.mulf %111, %112 : vector<3x256xf32>
    %114 = arith.addf %107, %113 : vector<3x256xf32>
    %c4 = arith.constant 4 : index
    %c0_67 = arith.constant 0 : index
    %c0_68 = arith.constant 0 : index
    %c0_69 = arith.constant 0 : index
    %115 = vector.load %arg3[%c4, %c0_67, %c0_68, %c0_69] : memref<9x3x3x1xf32, #tpu.memory_space<vmem>>, vector<1x1x3x1xf32>
    %116 = vector.shape_cast %115 : vector<1x1x3x1xf32> to vector<3x1xf32>
    %117 = vector.extract_strided_slice %1 {offsets = [0, 0], sizes = [1, 256], strides = [1, 1]} : vector<3x256xf32> to vector<1x256xf32>
    %118 = vector.broadcast %116 : vector<3x1xf32> to vector<3x256xf32>
    %119 = vector.broadcast %117 : vector<1x256xf32> to vector<3x256xf32>
    %120 = arith.mulf %118, %119 : vector<3x256xf32>
    %121 = arith.addf %114, %120 : vector<3x256xf32>
    %c4_70 = arith.constant 4 : index
    %c1_71 = arith.constant 1 : index
    %c0_72 = arith.constant 0 : index
    %c0_73 = arith.constant 0 : index
    %122 = vector.load %arg3[%c4_70, %c1_71, %c0_72, %c0_73] : memref<9x3x3x1xf32, #tpu.memory_space<vmem>>, vector<1x1x3x1xf32>
    %123 = vector.shape_cast %122 : vector<1x1x3x1xf32> to vector<3x1xf32>
    %124 = vector.extract_strided_slice %1 {offsets = [1, 0], sizes = [1, 256], strides = [1, 1]} : vector<3x256xf32> to vector<1x256xf32>
    %125 = vector.broadcast %123 : vector<3x1xf32> to vector<3x256xf32>
    %126 = vector.broadcast %124 : vector<1x256xf32> to vector<3x256xf32>
    %127 = arith.mulf %125, %126 : vector<3x256xf32>
    %128 = arith.addf %121, %127 : vector<3x256xf32>
    %c4_74 = arith.constant 4 : index
    %c2_75 = arith.constant 2 : index
    %c0_76 = arith.constant 0 : index
    %c0_77 = arith.constant 0 : index
    %129 = vector.load %arg3[%c4_74, %c2_75, %c0_76, %c0_77] : memref<9x3x3x1xf32, #tpu.memory_space<vmem>>, vector<1x1x3x1xf32>
    %130 = vector.shape_cast %129 : vector<1x1x3x1xf32> to vector<3x1xf32>
    %131 = vector.extract_strided_slice %1 {offsets = [2, 0], sizes = [1, 256], strides = [1, 1]} : vector<3x256xf32> to vector<1x256xf32>
    %132 = vector.broadcast %130 : vector<3x1xf32> to vector<3x256xf32>
    %133 = vector.broadcast %131 : vector<1x256xf32> to vector<3x256xf32>
    %134 = arith.mulf %132, %133 : vector<3x256xf32>
    %135 = arith.addf %128, %134 : vector<3x256xf32>
    %c255_i32 = arith.constant 255 : i32
    %136 = tpu.dynamic_rotate %1 by %c255_i32 dim 1 : vector<3x256xf32>, i32 -> vector<3x256xf32>
    %137 = vector.broadcast %11 : vector<1x256xf32> to vector<3x256xf32>
    %138 = arith.mulf %136, %137 : vector<3x256xf32>
    %c5_78 = arith.constant 5 : index
    %c0_79 = arith.constant 0 : index
    %c0_80 = arith.constant 0 : index
    %c0_81 = arith.constant 0 : index
    %139 = vector.load %arg3[%c5_78, %c0_79, %c0_80, %c0_81] : memref<9x3x3x1xf32, #tpu.memory_space<vmem>>, vector<1x1x3x1xf32>
    %140 = vector.shape_cast %139 : vector<1x1x3x1xf32> to vector<3x1xf32>
    %141 = vector.extract_strided_slice %138 {offsets = [0, 0], sizes = [1, 256], strides = [1, 1]} : vector<3x256xf32> to vector<1x256xf32>
    %142 = vector.broadcast %140 : vector<3x1xf32> to vector<3x256xf32>
    %143 = vector.broadcast %141 : vector<1x256xf32> to vector<3x256xf32>
    %144 = arith.mulf %142, %143 : vector<3x256xf32>
    %145 = arith.addf %135, %144 : vector<3x256xf32>
    %c5_82 = arith.constant 5 : index
    %c1_83 = arith.constant 1 : index
    %c0_84 = arith.constant 0 : index
    %c0_85 = arith.constant 0 : index
    %146 = vector.load %arg3[%c5_82, %c1_83, %c0_84, %c0_85] : memref<9x3x3x1xf32, #tpu.memory_space<vmem>>, vector<1x1x3x1xf32>
    %147 = vector.shape_cast %146 : vector<1x1x3x1xf32> to vector<3x1xf32>
    %148 = vector.extract_strided_slice %138 {offsets = [1, 0], sizes = [1, 256], strides = [1, 1]} : vector<3x256xf32> to vector<1x256xf32>
    %149 = vector.broadcast %147 : vector<3x1xf32> to vector<3x256xf32>
    %150 = vector.broadcast %148 : vector<1x256xf32> to vector<3x256xf32>
    %151 = arith.mulf %149, %150 : vector<3x256xf32>
    %152 = arith.addf %145, %151 : vector<3x256xf32>
    %c5_86 = arith.constant 5 : index
    %c2_87 = arith.constant 2 : index
    %c0_88 = arith.constant 0 : index
    %c0_89 = arith.constant 0 : index
    %153 = vector.load %arg3[%c5_86, %c2_87, %c0_88, %c0_89] : memref<9x3x3x1xf32, #tpu.memory_space<vmem>>, vector<1x1x3x1xf32>
    %154 = vector.shape_cast %153 : vector<1x1x3x1xf32> to vector<3x1xf32>
    %155 = vector.extract_strided_slice %138 {offsets = [2, 0], sizes = [1, 256], strides = [1, 1]} : vector<3x256xf32> to vector<1x256xf32>
    %156 = vector.broadcast %154 : vector<3x1xf32> to vector<3x256xf32>
    %157 = vector.broadcast %155 : vector<1x256xf32> to vector<3x256xf32>
    %158 = arith.mulf %156, %157 : vector<3x256xf32>
    %159 = arith.addf %152, %158 : vector<3x256xf32>
    %c241_i32 = arith.constant 241 : i32
    %160 = tpu.dynamic_rotate %1 by %c241_i32 dim 1 : vector<3x256xf32>, i32 -> vector<3x256xf32>
    %161 = vector.broadcast %13 : vector<1x256xf32> to vector<3x256xf32>
    %162 = arith.mulf %160, %161 : vector<3x256xf32>
    %c6_90 = arith.constant 6 : index
    %c0_91 = arith.constant 0 : index
    %c0_92 = arith.constant 0 : index
    %c0_93 = arith.constant 0 : index
    %163 = vector.load %arg3[%c6_90, %c0_91, %c0_92, %c0_93] : memref<9x3x3x1xf32, #tpu.memory_space<vmem>>, vector<1x1x3x1xf32>
    %164 = vector.shape_cast %163 : vector<1x1x3x1xf32> to vector<3x1xf32>
    %165 = vector.extract_strided_slice %162 {offsets = [0, 0], sizes = [1, 256], strides = [1, 1]} : vector<3x256xf32> to vector<1x256xf32>
    %166 = vector.broadcast %164 : vector<3x1xf32> to vector<3x256xf32>
    %167 = vector.broadcast %165 : vector<1x256xf32> to vector<3x256xf32>
    %168 = arith.mulf %166, %167 : vector<3x256xf32>
    %169 = arith.addf %159, %168 : vector<3x256xf32>
    %c6_94 = arith.constant 6 : index
    %c1_95 = arith.constant 1 : index
    %c0_96 = arith.constant 0 : index
    %c0_97 = arith.constant 0 : index
    %170 = vector.load %arg3[%c6_94, %c1_95, %c0_96, %c0_97] : memref<9x3x3x1xf32, #tpu.memory_space<vmem>>, vector<1x1x3x1xf32>
    %171 = vector.shape_cast %170 : vector<1x1x3x1xf32> to vector<3x1xf32>
    %172 = vector.extract_strided_slice %162 {offsets = [1, 0], sizes = [1, 256], strides = [1, 1]} : vector<3x256xf32> to vector<1x256xf32>
    %173 = vector.broadcast %171 : vector<3x1xf32> to vector<3x256xf32>
    %174 = vector.broadcast %172 : vector<1x256xf32> to vector<3x256xf32>
    %175 = arith.mulf %173, %174 : vector<3x256xf32>
    %176 = arith.addf %169, %175 : vector<3x256xf32>
    %c6_98 = arith.constant 6 : index
    %c2_99 = arith.constant 2 : index
    %c0_100 = arith.constant 0 : index
    %c0_101 = arith.constant 0 : index
    %177 = vector.load %arg3[%c6_98, %c2_99, %c0_100, %c0_101] : memref<9x3x3x1xf32, #tpu.memory_space<vmem>>, vector<1x1x3x1xf32>
    %178 = vector.shape_cast %177 : vector<1x1x3x1xf32> to vector<3x1xf32>
    %179 = vector.extract_strided_slice %162 {offsets = [2, 0], sizes = [1, 256], strides = [1, 1]} : vector<3x256xf32> to vector<1x256xf32>
    %180 = vector.broadcast %178 : vector<3x1xf32> to vector<3x256xf32>
    %181 = vector.broadcast %179 : vector<1x256xf32> to vector<3x256xf32>
    %182 = arith.mulf %180, %181 : vector<3x256xf32>
    %183 = arith.addf %176, %182 : vector<3x256xf32>
    %c240_i32 = arith.constant 240 : i32
    %184 = tpu.dynamic_rotate %1 by %c240_i32 dim 1 : vector<3x256xf32>, i32 -> vector<3x256xf32>
    %185 = vector.broadcast %15 : vector<1x256xf32> to vector<3x256xf32>
    %186 = arith.mulf %184, %185 : vector<3x256xf32>
    %c7_102 = arith.constant 7 : index
    %c0_103 = arith.constant 0 : index
    %c0_104 = arith.constant 0 : index
    %c0_105 = arith.constant 0 : index
    %187 = vector.load %arg3[%c7_102, %c0_103, %c0_104, %c0_105] : memref<9x3x3x1xf32, #tpu.memory_space<vmem>>, vector<1x1x3x1xf32>
    %188 = vector.shape_cast %187 : vector<1x1x3x1xf32> to vector<3x1xf32>
    %189 = vector.extract_strided_slice %186 {offsets = [0, 0], sizes = [1, 256], strides = [1, 1]} : vector<3x256xf32> to vector<1x256xf32>
    %190 = vector.broadcast %188 : vector<3x1xf32> to vector<3x256xf32>
    %191 = vector.broadcast %189 : vector<1x256xf32> to vector<3x256xf32>
    %192 = arith.mulf %190, %191 : vector<3x256xf32>
    %193 = arith.addf %183, %192 : vector<3x256xf32>
    %c7_106 = arith.constant 7 : index
    %c1_107 = arith.constant 1 : index
    %c0_108 = arith.constant 0 : index
    %c0_109 = arith.constant 0 : index
    %194 = vector.load %arg3[%c7_106, %c1_107, %c0_108, %c0_109] : memref<9x3x3x1xf32, #tpu.memory_space<vmem>>, vector<1x1x3x1xf32>
    %195 = vector.shape_cast %194 : vector<1x1x3x1xf32> to vector<3x1xf32>
    %196 = vector.extract_strided_slice %186 {offsets = [1, 0], sizes = [1, 256], strides = [1, 1]} : vector<3x256xf32> to vector<1x256xf32>
    %197 = vector.broadcast %195 : vector<3x1xf32> to vector<3x256xf32>
    %198 = vector.broadcast %196 : vector<1x256xf32> to vector<3x256xf32>
    %199 = arith.mulf %197, %198 : vector<3x256xf32>
    %200 = arith.addf %193, %199 : vector<3x256xf32>
    %c7_110 = arith.constant 7 : index
    %c2_111 = arith.constant 2 : index
    %c0_112 = arith.constant 0 : index
    %c0_113 = arith.constant 0 : index
    %201 = vector.load %arg3[%c7_110, %c2_111, %c0_112, %c0_113] : memref<9x3x3x1xf32, #tpu.memory_space<vmem>>, vector<1x1x3x1xf32>
    %202 = vector.shape_cast %201 : vector<1x1x3x1xf32> to vector<3x1xf32>
    %203 = vector.extract_strided_slice %186 {offsets = [2, 0], sizes = [1, 256], strides = [1, 1]} : vector<3x256xf32> to vector<1x256xf32>
    %204 = vector.broadcast %202 : vector<3x1xf32> to vector<3x256xf32>
    %205 = vector.broadcast %203 : vector<1x256xf32> to vector<3x256xf32>
    %206 = arith.mulf %204, %205 : vector<3x256xf32>
    %207 = arith.addf %200, %206 : vector<3x256xf32>
    %c239_i32 = arith.constant 239 : i32
    %208 = tpu.dynamic_rotate %1 by %c239_i32 dim 1 : vector<3x256xf32>, i32 -> vector<3x256xf32>
    %209 = vector.broadcast %17 : vector<1x256xf32> to vector<3x256xf32>
    %210 = arith.mulf %208, %209 : vector<3x256xf32>
    %c8_114 = arith.constant 8 : index
    %c0_115 = arith.constant 0 : index
    %c0_116 = arith.constant 0 : index
    %c0_117 = arith.constant 0 : index
    %211 = vector.load %arg3[%c8_114, %c0_115, %c0_116, %c0_117] : memref<9x3x3x1xf32, #tpu.memory_space<vmem>>, vector<1x1x3x1xf32>
    %212 = vector.shape_cast %211 : vector<1x1x3x1xf32> to vector<3x1xf32>
    %213 = vector.extract_strided_slice %210 {offsets = [0, 0], sizes = [1, 256], strides = [1, 1]} : vector<3x256xf32> to vector<1x256xf32>
    %214 = vector.broadcast %212 : vector<3x1xf32> to vector<3x256xf32>
    %215 = vector.broadcast %213 : vector<1x256xf32> to vector<3x256xf32>
    %216 = arith.mulf %214, %215 : vector<3x256xf32>
    %217 = arith.addf %207, %216 : vector<3x256xf32>
    %c8_118 = arith.constant 8 : index
    %c1_119 = arith.constant 1 : index
    %c0_120 = arith.constant 0 : index
    %c0_121 = arith.constant 0 : index
    %218 = vector.load %arg3[%c8_118, %c1_119, %c0_120, %c0_121] : memref<9x3x3x1xf32, #tpu.memory_space<vmem>>, vector<1x1x3x1xf32>
    %219 = vector.shape_cast %218 : vector<1x1x3x1xf32> to vector<3x1xf32>
    %220 = vector.extract_strided_slice %210 {offsets = [1, 0], sizes = [1, 256], strides = [1, 1]} : vector<3x256xf32> to vector<1x256xf32>
    %221 = vector.broadcast %219 : vector<3x1xf32> to vector<3x256xf32>
    %222 = vector.broadcast %220 : vector<1x256xf32> to vector<3x256xf32>
    %223 = arith.mulf %221, %222 : vector<3x256xf32>
    %224 = arith.addf %217, %223 : vector<3x256xf32>
    %c8_122 = arith.constant 8 : index
    %c2_123 = arith.constant 2 : index
    %c0_124 = arith.constant 0 : index
    %c0_125 = arith.constant 0 : index
    %225 = vector.load %arg3[%c8_122, %c2_123, %c0_124, %c0_125] : memref<9x3x3x1xf32, #tpu.memory_space<vmem>>, vector<1x1x3x1xf32>
    %226 = vector.shape_cast %225 : vector<1x1x3x1xf32> to vector<3x1xf32>
    %227 = vector.extract_strided_slice %210 {offsets = [2, 0], sizes = [1, 256], strides = [1, 1]} : vector<3x256xf32> to vector<1x256xf32>
    %228 = vector.broadcast %226 : vector<3x1xf32> to vector<3x256xf32>
    %229 = vector.broadcast %227 : vector<1x256xf32> to vector<3x256xf32>
    %230 = arith.mulf %228, %229 : vector<3x256xf32>
    %231 = arith.addf %224, %230 : vector<3x256xf32>
    %c0_126 = arith.constant 0 : index
    %c0_127 = arith.constant 0 : index
    %232 = vector.load %arg4[%c0_126, %c0_127] : memref<3x1xf32, #tpu.memory_space<vmem>>, vector<3x1xf32>
    %233 = vector.broadcast %232 : vector<3x1xf32> to vector<3x256xf32>
    %234 = arith.addf %231, %233 : vector<3x256xf32>
    %cst_128 = arith.constant 0.000000e+00 : f32
    %235 = vector.broadcast %cst_128 : f32 to vector<3x256xf32>
    %236 = arith.maximumf %234, %235 : vector<3x256xf32>
    %cst_129 = arith.constant 0.000000e+00 : f32
    %237 = vector.broadcast %cst_129 : f32 to vector<3x256xf32>
    %c17_i32_130 = arith.constant 17 : i32
    %238 = tpu.dynamic_rotate %236 by %c17_i32_130 dim 1 : vector<3x256xf32>, i32 -> vector<3x256xf32>
    %239 = vector.broadcast %3 : vector<1x256xf32> to vector<3x256xf32>
    %240 = arith.mulf %238, %239 : vector<3x256xf32>
    %c0_131 = arith.constant 0 : index
    %c0_132 = arith.constant 0 : index
    %c0_133 = arith.constant 0 : index
    %c0_134 = arith.constant 0 : index
    %241 = vector.load %arg5[%c0_131, %c0_132, %c0_133, %c0_134] : memref<9x3x3x1xf32, #tpu.memory_space<vmem>>, vector<1x1x3x1xf32>
    %242 = vector.shape_cast %241 : vector<1x1x3x1xf32> to vector<3x1xf32>
    %243 = vector.extract_strided_slice %240 {offsets = [0, 0], sizes = [1, 256], strides = [1, 1]} : vector<3x256xf32> to vector<1x256xf32>
    %244 = vector.broadcast %242 : vector<3x1xf32> to vector<3x256xf32>
    %245 = vector.broadcast %243 : vector<1x256xf32> to vector<3x256xf32>
    %246 = arith.mulf %244, %245 : vector<3x256xf32>
    %247 = arith.addf %237, %246 : vector<3x256xf32>
    %c0_135 = arith.constant 0 : index
    %c1_136 = arith.constant 1 : index
    %c0_137 = arith.constant 0 : index
    %c0_138 = arith.constant 0 : index
    %248 = vector.load %arg5[%c0_135, %c1_136, %c0_137, %c0_138] : memref<9x3x3x1xf32, #tpu.memory_space<vmem>>, vector<1x1x3x1xf32>
    %249 = vector.shape_cast %248 : vector<1x1x3x1xf32> to vector<3x1xf32>
    %250 = vector.extract_strided_slice %240 {offsets = [1, 0], sizes = [1, 256], strides = [1, 1]} : vector<3x256xf32> to vector<1x256xf32>
    %251 = vector.broadcast %249 : vector<3x1xf32> to vector<3x256xf32>
    %252 = vector.broadcast %250 : vector<1x256xf32> to vector<3x256xf32>
    %253 = arith.mulf %251, %252 : vector<3x256xf32>
    %254 = arith.addf %247, %253 : vector<3x256xf32>
    %c0_139 = arith.constant 0 : index
    %c2_140 = arith.constant 2 : index
    %c0_141 = arith.constant 0 : index
    %c0_142 = arith.constant 0 : index
    %255 = vector.load %arg5[%c0_139, %c2_140, %c0_141, %c0_142] : memref<9x3x3x1xf32, #tpu.memory_space<vmem>>, vector<1x1x3x1xf32>
    %256 = vector.shape_cast %255 : vector<1x1x3x1xf32> to vector<3x1xf32>
    %257 = vector.extract_strided_slice %240 {offsets = [2, 0], sizes = [1, 256], strides = [1, 1]} : vector<3x256xf32> to vector<1x256xf32>
    %258 = vector.broadcast %256 : vector<3x1xf32> to vector<3x256xf32>
    %259 = vector.broadcast %257 : vector<1x256xf32> to vector<3x256xf32>
    %260 = arith.mulf %258, %259 : vector<3x256xf32>
    %261 = arith.addf %254, %260 : vector<3x256xf32>
    %c16_i32_143 = arith.constant 16 : i32
    %262 = tpu.dynamic_rotate %236 by %c16_i32_143 dim 1 : vector<3x256xf32>, i32 -> vector<3x256xf32>
    %263 = vector.broadcast %5 : vector<1x256xf32> to vector<3x256xf32>
    %264 = arith.mulf %262, %263 : vector<3x256xf32>
    %c1_144 = arith.constant 1 : index
    %c0_145 = arith.constant 0 : index
    %c0_146 = arith.constant 0 : index
    %c0_147 = arith.constant 0 : index
    %265 = vector.load %arg5[%c1_144, %c0_145, %c0_146, %c0_147] : memref<9x3x3x1xf32, #tpu.memory_space<vmem>>, vector<1x1x3x1xf32>
    %266 = vector.shape_cast %265 : vector<1x1x3x1xf32> to vector<3x1xf32>
    %267 = vector.extract_strided_slice %264 {offsets = [0, 0], sizes = [1, 256], strides = [1, 1]} : vector<3x256xf32> to vector<1x256xf32>
    %268 = vector.broadcast %266 : vector<3x1xf32> to vector<3x256xf32>
    %269 = vector.broadcast %267 : vector<1x256xf32> to vector<3x256xf32>
    %270 = arith.mulf %268, %269 : vector<3x256xf32>
    %271 = arith.addf %261, %270 : vector<3x256xf32>
    %c1_148 = arith.constant 1 : index
    %c1_149 = arith.constant 1 : index
    %c0_150 = arith.constant 0 : index
    %c0_151 = arith.constant 0 : index
    %272 = vector.load %arg5[%c1_148, %c1_149, %c0_150, %c0_151] : memref<9x3x3x1xf32, #tpu.memory_space<vmem>>, vector<1x1x3x1xf32>
    %273 = vector.shape_cast %272 : vector<1x1x3x1xf32> to vector<3x1xf32>
    %274 = vector.extract_strided_slice %264 {offsets = [1, 0], sizes = [1, 256], strides = [1, 1]} : vector<3x256xf32> to vector<1x256xf32>
    %275 = vector.broadcast %273 : vector<3x1xf32> to vector<3x256xf32>
    %276 = vector.broadcast %274 : vector<1x256xf32> to vector<3x256xf32>
    %277 = arith.mulf %275, %276 : vector<3x256xf32>
    %278 = arith.addf %271, %277 : vector<3x256xf32>
    %c1_152 = arith.constant 1 : index
    %c2_153 = arith.constant 2 : index
    %c0_154 = arith.constant 0 : index
    %c0_155 = arith.constant 0 : index
    %279 = vector.load %arg5[%c1_152, %c2_153, %c0_154, %c0_155] : memref<9x3x3x1xf32, #tpu.memory_space<vmem>>, vector<1x1x3x1xf32>
    %280 = vector.shape_cast %279 : vector<1x1x3x1xf32> to vector<3x1xf32>
    %281 = vector.extract_strided_slice %264 {offsets = [2, 0], sizes = [1, 256], strides = [1, 1]} : vector<3x256xf32> to vector<1x256xf32>
    %282 = vector.broadcast %280 : vector<3x1xf32> to vector<3x256xf32>
    %283 = vector.broadcast %281 : vector<1x256xf32> to vector<3x256xf32>
    %284 = arith.mulf %282, %283 : vector<3x256xf32>
    %285 = arith.addf %278, %284 : vector<3x256xf32>
    %c15_i32_156 = arith.constant 15 : i32
    %286 = tpu.dynamic_rotate %236 by %c15_i32_156 dim 1 : vector<3x256xf32>, i32 -> vector<3x256xf32>
    %287 = vector.broadcast %7 : vector<1x256xf32> to vector<3x256xf32>
    %288 = arith.mulf %286, %287 : vector<3x256xf32>
    %c2_157 = arith.constant 2 : index
    %c0_158 = arith.constant 0 : index
    %c0_159 = arith.constant 0 : index
    %c0_160 = arith.constant 0 : index
    %289 = vector.load %arg5[%c2_157, %c0_158, %c0_159, %c0_160] : memref<9x3x3x1xf32, #tpu.memory_space<vmem>>, vector<1x1x3x1xf32>
    %290 = vector.shape_cast %289 : vector<1x1x3x1xf32> to vector<3x1xf32>
    %291 = vector.extract_strided_slice %288 {offsets = [0, 0], sizes = [1, 256], strides = [1, 1]} : vector<3x256xf32> to vector<1x256xf32>
    %292 = vector.broadcast %290 : vector<3x1xf32> to vector<3x256xf32>
    %293 = vector.broadcast %291 : vector<1x256xf32> to vector<3x256xf32>
    %294 = arith.mulf %292, %293 : vector<3x256xf32>
    %295 = arith.addf %285, %294 : vector<3x256xf32>
    %c2_161 = arith.constant 2 : index
    %c1_162 = arith.constant 1 : index
    %c0_163 = arith.constant 0 : index
    %c0_164 = arith.constant 0 : index
    %296 = vector.load %arg5[%c2_161, %c1_162, %c0_163, %c0_164] : memref<9x3x3x1xf32, #tpu.memory_space<vmem>>, vector<1x1x3x1xf32>
    %297 = vector.shape_cast %296 : vector<1x1x3x1xf32> to vector<3x1xf32>
    %298 = vector.extract_strided_slice %288 {offsets = [1, 0], sizes = [1, 256], strides = [1, 1]} : vector<3x256xf32> to vector<1x256xf32>
    %299 = vector.broadcast %297 : vector<3x1xf32> to vector<3x256xf32>
    %300 = vector.broadcast %298 : vector<1x256xf32> to vector<3x256xf32>
    %301 = arith.mulf %299, %300 : vector<3x256xf32>
    %302 = arith.addf %295, %301 : vector<3x256xf32>
    %c2_165 = arith.constant 2 : index
    %c2_166 = arith.constant 2 : index
    %c0_167 = arith.constant 0 : index
    %c0_168 = arith.constant 0 : index
    %303 = vector.load %arg5[%c2_165, %c2_166, %c0_167, %c0_168] : memref<9x3x3x1xf32, #tpu.memory_space<vmem>>, vector<1x1x3x1xf32>
    %304 = vector.shape_cast %303 : vector<1x1x3x1xf32> to vector<3x1xf32>
    %305 = vector.extract_strided_slice %288 {offsets = [2, 0], sizes = [1, 256], strides = [1, 1]} : vector<3x256xf32> to vector<1x256xf32>
    %306 = vector.broadcast %304 : vector<3x1xf32> to vector<3x256xf32>
    %307 = vector.broadcast %305 : vector<1x256xf32> to vector<3x256xf32>
    %308 = arith.mulf %306, %307 : vector<3x256xf32>
    %309 = arith.addf %302, %308 : vector<3x256xf32>
    %c1_i32_169 = arith.constant 1 : i32
    %310 = tpu.dynamic_rotate %236 by %c1_i32_169 dim 1 : vector<3x256xf32>, i32 -> vector<3x256xf32>
    %311 = vector.broadcast %9 : vector<1x256xf32> to vector<3x256xf32>
    %312 = arith.mulf %310, %311 : vector<3x256xf32>
    %c3_170 = arith.constant 3 : index
    %c0_171 = arith.constant 0 : index
    %c0_172 = arith.constant 0 : index
    %c0_173 = arith.constant 0 : index
    %313 = vector.load %arg5[%c3_170, %c0_171, %c0_172, %c0_173] : memref<9x3x3x1xf32, #tpu.memory_space<vmem>>, vector<1x1x3x1xf32>
    %314 = vector.shape_cast %313 : vector<1x1x3x1xf32> to vector<3x1xf32>
    %315 = vector.extract_strided_slice %312 {offsets = [0, 0], sizes = [1, 256], strides = [1, 1]} : vector<3x256xf32> to vector<1x256xf32>
    %316 = vector.broadcast %314 : vector<3x1xf32> to vector<3x256xf32>
    %317 = vector.broadcast %315 : vector<1x256xf32> to vector<3x256xf32>
    %318 = arith.mulf %316, %317 : vector<3x256xf32>
    %319 = arith.addf %309, %318 : vector<3x256xf32>
    %c3_174 = arith.constant 3 : index
    %c1_175 = arith.constant 1 : index
    %c0_176 = arith.constant 0 : index
    %c0_177 = arith.constant 0 : index
    %320 = vector.load %arg5[%c3_174, %c1_175, %c0_176, %c0_177] : memref<9x3x3x1xf32, #tpu.memory_space<vmem>>, vector<1x1x3x1xf32>
    %321 = vector.shape_cast %320 : vector<1x1x3x1xf32> to vector<3x1xf32>
    %322 = vector.extract_strided_slice %312 {offsets = [1, 0], sizes = [1, 256], strides = [1, 1]} : vector<3x256xf32> to vector<1x256xf32>
    %323 = vector.broadcast %321 : vector<3x1xf32> to vector<3x256xf32>
    %324 = vector.broadcast %322 : vector<1x256xf32> to vector<3x256xf32>
    %325 = arith.mulf %323, %324 : vector<3x256xf32>
    %326 = arith.addf %319, %325 : vector<3x256xf32>
    %c3_178 = arith.constant 3 : index
    %c2_179 = arith.constant 2 : index
    %c0_180 = arith.constant 0 : index
    %c0_181 = arith.constant 0 : index
    %327 = vector.load %arg5[%c3_178, %c2_179, %c0_180, %c0_181] : memref<9x3x3x1xf32, #tpu.memory_space<vmem>>, vector<1x1x3x1xf32>
    %328 = vector.shape_cast %327 : vector<1x1x3x1xf32> to vector<3x1xf32>
    %329 = vector.extract_strided_slice %312 {offsets = [2, 0], sizes = [1, 256], strides = [1, 1]} : vector<3x256xf32> to vector<1x256xf32>
    %330 = vector.broadcast %328 : vector<3x1xf32> to vector<3x256xf32>
    %331 = vector.broadcast %329 : vector<1x256xf32> to vector<3x256xf32>
    %332 = arith.mulf %330, %331 : vector<3x256xf32>
    %333 = arith.addf %326, %332 : vector<3x256xf32>
    %c4_182 = arith.constant 4 : index
    %c0_183 = arith.constant 0 : index
    %c0_184 = arith.constant 0 : index
    %c0_185 = arith.constant 0 : index
    %334 = vector.load %arg5[%c4_182, %c0_183, %c0_184, %c0_185] : memref<9x3x3x1xf32, #tpu.memory_space<vmem>>, vector<1x1x3x1xf32>
    %335 = vector.shape_cast %334 : vector<1x1x3x1xf32> to vector<3x1xf32>
    %336 = vector.extract_strided_slice %236 {offsets = [0, 0], sizes = [1, 256], strides = [1, 1]} : vector<3x256xf32> to vector<1x256xf32>
    %337 = vector.broadcast %335 : vector<3x1xf32> to vector<3x256xf32>
    %338 = vector.broadcast %336 : vector<1x256xf32> to vector<3x256xf32>
    %339 = arith.mulf %337, %338 : vector<3x256xf32>
    %340 = arith.addf %333, %339 : vector<3x256xf32>
    %c4_186 = arith.constant 4 : index
    %c1_187 = arith.constant 1 : index
    %c0_188 = arith.constant 0 : index
    %c0_189 = arith.constant 0 : index
    %341 = vector.load %arg5[%c4_186, %c1_187, %c0_188, %c0_189] : memref<9x3x3x1xf32, #tpu.memory_space<vmem>>, vector<1x1x3x1xf32>
    %342 = vector.shape_cast %341 : vector<1x1x3x1xf32> to vector<3x1xf32>
    %343 = vector.extract_strided_slice %236 {offsets = [1, 0], sizes = [1, 256], strides = [1, 1]} : vector<3x256xf32> to vector<1x256xf32>
    %344 = vector.broadcast %342 : vector<3x1xf32> to vector<3x256xf32>
    %345 = vector.broadcast %343 : vector<1x256xf32> to vector<3x256xf32>
    %346 = arith.mulf %344, %345 : vector<3x256xf32>
    %347 = arith.addf %340, %346 : vector<3x256xf32>
    %c4_190 = arith.constant 4 : index
    %c2_191 = arith.constant 2 : index
    %c0_192 = arith.constant 0 : index
    %c0_193 = arith.constant 0 : index
    %348 = vector.load %arg5[%c4_190, %c2_191, %c0_192, %c0_193] : memref<9x3x3x1xf32, #tpu.memory_space<vmem>>, vector<1x1x3x1xf32>
    %349 = vector.shape_cast %348 : vector<1x1x3x1xf32> to vector<3x1xf32>
    %350 = vector.extract_strided_slice %236 {offsets = [2, 0], sizes = [1, 256], strides = [1, 1]} : vector<3x256xf32> to vector<1x256xf32>
    %351 = vector.broadcast %349 : vector<3x1xf32> to vector<3x256xf32>
    %352 = vector.broadcast %350 : vector<1x256xf32> to vector<3x256xf32>
    %353 = arith.mulf %351, %352 : vector<3x256xf32>
    %354 = arith.addf %347, %353 : vector<3x256xf32>
    %c255_i32_194 = arith.constant 255 : i32
    %355 = tpu.dynamic_rotate %236 by %c255_i32_194 dim 1 : vector<3x256xf32>, i32 -> vector<3x256xf32>
    %356 = vector.broadcast %11 : vector<1x256xf32> to vector<3x256xf32>
    %357 = arith.mulf %355, %356 : vector<3x256xf32>
    %c5_195 = arith.constant 5 : index
    %c0_196 = arith.constant 0 : index
    %c0_197 = arith.constant 0 : index
    %c0_198 = arith.constant 0 : index
    %358 = vector.load %arg5[%c5_195, %c0_196, %c0_197, %c0_198] : memref<9x3x3x1xf32, #tpu.memory_space<vmem>>, vector<1x1x3x1xf32>
    %359 = vector.shape_cast %358 : vector<1x1x3x1xf32> to vector<3x1xf32>
    %360 = vector.extract_strided_slice %357 {offsets = [0, 0], sizes = [1, 256], strides = [1, 1]} : vector<3x256xf32> to vector<1x256xf32>
    %361 = vector.broadcast %359 : vector<3x1xf32> to vector<3x256xf32>
    %362 = vector.broadcast %360 : vector<1x256xf32> to vector<3x256xf32>
    %363 = arith.mulf %361, %362 : vector<3x256xf32>
    %364 = arith.addf %354, %363 : vector<3x256xf32>
    %c5_199 = arith.constant 5 : index
    %c1_200 = arith.constant 1 : index
    %c0_201 = arith.constant 0 : index
    %c0_202 = arith.constant 0 : index
    %365 = vector.load %arg5[%c5_199, %c1_200, %c0_201, %c0_202] : memref<9x3x3x1xf32, #tpu.memory_space<vmem>>, vector<1x1x3x1xf32>
    %366 = vector.shape_cast %365 : vector<1x1x3x1xf32> to vector<3x1xf32>
    %367 = vector.extract_strided_slice %357 {offsets = [1, 0], sizes = [1, 256], strides = [1, 1]} : vector<3x256xf32> to vector<1x256xf32>
    %368 = vector.broadcast %366 : vector<3x1xf32> to vector<3x256xf32>
    %369 = vector.broadcast %367 : vector<1x256xf32> to vector<3x256xf32>
    %370 = arith.mulf %368, %369 : vector<3x256xf32>
    %371 = arith.addf %364, %370 : vector<3x256xf32>
    %c5_203 = arith.constant 5 : index
    %c2_204 = arith.constant 2 : index
    %c0_205 = arith.constant 0 : index
    %c0_206 = arith.constant 0 : index
    %372 = vector.load %arg5[%c5_203, %c2_204, %c0_205, %c0_206] : memref<9x3x3x1xf32, #tpu.memory_space<vmem>>, vector<1x1x3x1xf32>
    %373 = vector.shape_cast %372 : vector<1x1x3x1xf32> to vector<3x1xf32>
    %374 = vector.extract_strided_slice %357 {offsets = [2, 0], sizes = [1, 256], strides = [1, 1]} : vector<3x256xf32> to vector<1x256xf32>
    %375 = vector.broadcast %373 : vector<3x1xf32> to vector<3x256xf32>
    %376 = vector.broadcast %374 : vector<1x256xf32> to vector<3x256xf32>
    %377 = arith.mulf %375, %376 : vector<3x256xf32>
    %378 = arith.addf %371, %377 : vector<3x256xf32>
    %c241_i32_207 = arith.constant 241 : i32
    %379 = tpu.dynamic_rotate %236 by %c241_i32_207 dim 1 : vector<3x256xf32>, i32 -> vector<3x256xf32>
    %380 = vector.broadcast %13 : vector<1x256xf32> to vector<3x256xf32>
    %381 = arith.mulf %379, %380 : vector<3x256xf32>
    %c6_208 = arith.constant 6 : index
    %c0_209 = arith.constant 0 : index
    %c0_210 = arith.constant 0 : index
    %c0_211 = arith.constant 0 : index
    %382 = vector.load %arg5[%c6_208, %c0_209, %c0_210, %c0_211] : memref<9x3x3x1xf32, #tpu.memory_space<vmem>>, vector<1x1x3x1xf32>
    %383 = vector.shape_cast %382 : vector<1x1x3x1xf32> to vector<3x1xf32>
    %384 = vector.extract_strided_slice %381 {offsets = [0, 0], sizes = [1, 256], strides = [1, 1]} : vector<3x256xf32> to vector<1x256xf32>
    %385 = vector.broadcast %383 : vector<3x1xf32> to vector<3x256xf32>
    %386 = vector.broadcast %384 : vector<1x256xf32> to vector<3x256xf32>
    %387 = arith.mulf %385, %386 : vector<3x256xf32>
    %388 = arith.addf %378, %387 : vector<3x256xf32>
    %c6_212 = arith.constant 6 : index
    %c1_213 = arith.constant 1 : index
    %c0_214 = arith.constant 0 : index
    %c0_215 = arith.constant 0 : index
    %389 = vector.load %arg5[%c6_212, %c1_213, %c0_214, %c0_215] : memref<9x3x3x1xf32, #tpu.memory_space<vmem>>, vector<1x1x3x1xf32>
    %390 = vector.shape_cast %389 : vector<1x1x3x1xf32> to vector<3x1xf32>
    %391 = vector.extract_strided_slice %381 {offsets = [1, 0], sizes = [1, 256], strides = [1, 1]} : vector<3x256xf32> to vector<1x256xf32>
    %392 = vector.broadcast %390 : vector<3x1xf32> to vector<3x256xf32>
    %393 = vector.broadcast %391 : vector<1x256xf32> to vector<3x256xf32>
    %394 = arith.mulf %392, %393 : vector<3x256xf32>
    %395 = arith.addf %388, %394 : vector<3x256xf32>
    %c6_216 = arith.constant 6 : index
    %c2_217 = arith.constant 2 : index
    %c0_218 = arith.constant 0 : index
    %c0_219 = arith.constant 0 : index
    %396 = vector.load %arg5[%c6_216, %c2_217, %c0_218, %c0_219] : memref<9x3x3x1xf32, #tpu.memory_space<vmem>>, vector<1x1x3x1xf32>
    %397 = vector.shape_cast %396 : vector<1x1x3x1xf32> to vector<3x1xf32>
    %398 = vector.extract_strided_slice %381 {offsets = [2, 0], sizes = [1, 256], strides = [1, 1]} : vector<3x256xf32> to vector<1x256xf32>
    %399 = vector.broadcast %397 : vector<3x1xf32> to vector<3x256xf32>
    %400 = vector.broadcast %398 : vector<1x256xf32> to vector<3x256xf32>
    %401 = arith.mulf %399, %400 : vector<3x256xf32>
    %402 = arith.addf %395, %401 : vector<3x256xf32>
    %c240_i32_220 = arith.constant 240 : i32
    %403 = tpu.dynamic_rotate %236 by %c240_i32_220 dim 1 : vector<3x256xf32>, i32 -> vector<3x256xf32>
    %404 = vector.broadcast %15 : vector<1x256xf32> to vector<3x256xf32>
    %405 = arith.mulf %403, %404 : vector<3x256xf32>
    %c7_221 = arith.constant 7 : index
    %c0_222 = arith.constant 0 : index
    %c0_223 = arith.constant 0 : index
    %c0_224 = arith.constant 0 : index
    %406 = vector.load %arg5[%c7_221, %c0_222, %c0_223, %c0_224] : memref<9x3x3x1xf32, #tpu.memory_space<vmem>>, vector<1x1x3x1xf32>
    %407 = vector.shape_cast %406 : vector<1x1x3x1xf32> to vector<3x1xf32>
    %408 = vector.extract_strided_slice %405 {offsets = [0, 0], sizes = [1, 256], strides = [1, 1]} : vector<3x256xf32> to vector<1x256xf32>
    %409 = vector.broadcast %407 : vector<3x1xf32> to vector<3x256xf32>
    %410 = vector.broadcast %408 : vector<1x256xf32> to vector<3x256xf32>
    %411 = arith.mulf %409, %410 : vector<3x256xf32>
    %412 = arith.addf %402, %411 : vector<3x256xf32>
    %c7_225 = arith.constant 7 : index
    %c1_226 = arith.constant 1 : index
    %c0_227 = arith.constant 0 : index
    %c0_228 = arith.constant 0 : index
    %413 = vector.load %arg5[%c7_225, %c1_226, %c0_227, %c0_228] : memref<9x3x3x1xf32, #tpu.memory_space<vmem>>, vector<1x1x3x1xf32>
    %414 = vector.shape_cast %413 : vector<1x1x3x1xf32> to vector<3x1xf32>
    %415 = vector.extract_strided_slice %405 {offsets = [1, 0], sizes = [1, 256], strides = [1, 1]} : vector<3x256xf32> to vector<1x256xf32>
    %416 = vector.broadcast %414 : vector<3x1xf32> to vector<3x256xf32>
    %417 = vector.broadcast %415 : vector<1x256xf32> to vector<3x256xf32>
    %418 = arith.mulf %416, %417 : vector<3x256xf32>
    %419 = arith.addf %412, %418 : vector<3x256xf32>
    %c7_229 = arith.constant 7 : index
    %c2_230 = arith.constant 2 : index
    %c0_231 = arith.constant 0 : index
    %c0_232 = arith.constant 0 : index
    %420 = vector.load %arg5[%c7_229, %c2_230, %c0_231, %c0_232] : memref<9x3x3x1xf32, #tpu.memory_space<vmem>>, vector<1x1x3x1xf32>
    %421 = vector.shape_cast %420 : vector<1x1x3x1xf32> to vector<3x1xf32>
    %422 = vector.extract_strided_slice %405 {offsets = [2, 0], sizes = [1, 256], strides = [1, 1]} : vector<3x256xf32> to vector<1x256xf32>
    %423 = vector.broadcast %421 : vector<3x1xf32> to vector<3x256xf32>
    %424 = vector.broadcast %422 : vector<1x256xf32> to vector<3x256xf32>
    %425 = arith.mulf %423, %424 : vector<3x256xf32>
    %426 = arith.addf %419, %425 : vector<3x256xf32>
    %c239_i32_233 = arith.constant 239 : i32
    %427 = tpu.dynamic_rotate %236 by %c239_i32_233 dim 1 : vector<3x256xf32>, i32 -> vector<3x256xf32>
    %428 = vector.broadcast %17 : vector<1x256xf32> to vector<3x256xf32>
    %429 = arith.mulf %427, %428 : vector<3x256xf32>
    %c8_234 = arith.constant 8 : index
    %c0_235 = arith.constant 0 : index
    %c0_236 = arith.constant 0 : index
    %c0_237 = arith.constant 0 : index
    %430 = vector.load %arg5[%c8_234, %c0_235, %c0_236, %c0_237] : memref<9x3x3x1xf32, #tpu.memory_space<vmem>>, vector<1x1x3x1xf32>
    %431 = vector.shape_cast %430 : vector<1x1x3x1xf32> to vector<3x1xf32>
    %432 = vector.extract_strided_slice %429 {offsets = [0, 0], sizes = [1, 256], strides = [1, 1]} : vector<3x256xf32> to vector<1x256xf32>
    %433 = vector.broadcast %431 : vector<3x1xf32> to vector<3x256xf32>
    %434 = vector.broadcast %432 : vector<1x256xf32> to vector<3x256xf32>
    %435 = arith.mulf %433, %434 : vector<3x256xf32>
    %436 = arith.addf %426, %435 : vector<3x256xf32>
    %c8_238 = arith.constant 8 : index
    %c1_239 = arith.constant 1 : index
    %c0_240 = arith.constant 0 : index
    %c0_241 = arith.constant 0 : index
    %437 = vector.load %arg5[%c8_238, %c1_239, %c0_240, %c0_241] : memref<9x3x3x1xf32, #tpu.memory_space<vmem>>, vector<1x1x3x1xf32>
    %438 = vector.shape_cast %437 : vector<1x1x3x1xf32> to vector<3x1xf32>
    %439 = vector.extract_strided_slice %429 {offsets = [1, 0], sizes = [1, 256], strides = [1, 1]} : vector<3x256xf32> to vector<1x256xf32>
    %440 = vector.broadcast %438 : vector<3x1xf32> to vector<3x256xf32>
    %441 = vector.broadcast %439 : vector<1x256xf32> to vector<3x256xf32>
    %442 = arith.mulf %440, %441 : vector<3x256xf32>
    %443 = arith.addf %436, %442 : vector<3x256xf32>
    %c8_242 = arith.constant 8 : index
    %c2_243 = arith.constant 2 : index
    %c0_244 = arith.constant 0 : index
    %c0_245 = arith.constant 0 : index
    %444 = vector.load %arg5[%c8_242, %c2_243, %c0_244, %c0_245] : memref<9x3x3x1xf32, #tpu.memory_space<vmem>>, vector<1x1x3x1xf32>
    %445 = vector.shape_cast %444 : vector<1x1x3x1xf32> to vector<3x1xf32>
    %446 = vector.extract_strided_slice %429 {offsets = [2, 0], sizes = [1, 256], strides = [1, 1]} : vector<3x256xf32> to vector<1x256xf32>
    %447 = vector.broadcast %445 : vector<3x1xf32> to vector<3x256xf32>
    %448 = vector.broadcast %446 : vector<1x256xf32> to vector<3x256xf32>
    %449 = arith.mulf %447, %448 : vector<3x256xf32>
    %450 = arith.addf %443, %449 : vector<3x256xf32>
    %c0_246 = arith.constant 0 : index
    %c0_247 = arith.constant 0 : index
    %451 = vector.load %arg6[%c0_246, %c0_247] : memref<3x1xf32, #tpu.memory_space<vmem>>, vector<3x1xf32>
    %452 = vector.broadcast %451 : vector<3x1xf32> to vector<3x256xf32>
    %453 = arith.addf %450, %452 : vector<3x256xf32>
    %cst_248 = arith.constant 0.000000e+00 : f32
    %454 = vector.broadcast %cst_248 : f32 to vector<3x256xf32>
    %455 = arith.maximumf %453, %454 : vector<3x256xf32>
    %456 = arith.addf %455, %1 : vector<3x256xf32>
    %c0_249 = arith.constant 0 : index
    %c0_250 = arith.constant 0 : index
    %c0_251 = arith.constant 0 : index
    %457 = vector.load %arg7[%c0_249, %c0_250, %c0_251] : memref<1x3x256xf32, #tpu.memory_space<vmem>>, vector<1x3x256xf32>
    %458 = vector.shape_cast %457 : vector<1x3x256xf32> to vector<3x256xf32>
    %459 = vector.shape_cast %456 : vector<3x256xf32> to vector<1x3x256xf32>
    tpu.vector_store %arg7[%c0_249, %c0_250, %c0_251], %459 {strides = array<i32>} : memref<1x3x256xf32, #tpu.memory_space<vmem>>, vector<1x3x256xf32>,
    return
  }
  func.func @transform_0(%arg0: i32) -> (i32, i32, i32) {
    %c0_i32 = arith.constant 0 : i32
    %c0_i32_0 = arith.constant 0 : i32
    %c0_i32_1 = arith.constant 0 : i32
    return %arg0, %c0_i32, %c0_i32_0 : i32, i32, i32
  }
  func.func @transform_1(%arg0: i32) -> (i32, i32, i32) {
    %c0_i32 = arith.constant 0 : i32
    %c0_i32_0 = arith.constant 0 : i32
    %c0_i32_1 = arith.constant 0 : i32
    %c0_i32_2 = arith.constant 0 : i32
    return %c0_i32, %c0_i32_0, %c0_i32_1 : i32, i32, i32
  }
  func.func @transform_2(%arg0: i32) -> (i32, i32, i32, i32) {
    %c0_i32 = arith.constant 0 : i32
    %c0_i32_0 = arith.constant 0 : i32
    %c0_i32_1 = arith.constant 0 : i32
    %c0_i32_2 = arith.constant 0 : i32
    %c0_i32_3 = arith.constant 0 : i32
    return %c0_i32, %c0_i32_0, %c0_i32_1, %c0_i32_2 : i32, i32, i32, i32
  }
  func.func @transform_3(%arg0: i32) -> (i32, i32) {
    %c0_i32 = arith.constant 0 : i32
    %c0_i32_0 = arith.constant 0 : i32
    %c0_i32_1 = arith.constant 0 : i32
    return %c0_i32, %c0_i32_0 : i32, i32
  }
  func.func @transform_4(%arg0: i32) -> (i32, i32, i32, i32) {
    %c0_i32 = arith.constant 0 : i32
    %c0_i32_0 = arith.constant 0 : i32
    %c0_i32_1 = arith.constant 0 : i32
    %c0_i32_2 = arith.constant 0 : i32
    %c0_i32_3 = arith.constant 0 : i32
    return %c0_i32, %c0_i32_0, %c0_i32_1, %c0_i32_2 : i32, i32, i32, i32
  }
  func.func @transform_5(%arg0: i32) -> (i32, i32) {
    %c0_i32 = arith.constant 0 : i32
    %c0_i32_0 = arith.constant 0 : i32
    %c0_i32_1 = arith.constant 0 : i32
    return %c0_i32, %c0_i32_0 : i32, i32
  }
  func.func @transform_6(%arg0: i32) -> (i32, i32, i32) {
    %c0_i32 = arith.constant 0 : i32
    %c0_i32_0 = arith.constant 0 : i32
    %c0_i32_1 = arith.constant 0 : i32
    return %arg0, %c0_i32, %c0_i32_0 : i32, i32, i32
  }
}

</mosaic_0001>

<llo_original>
// kernel: simple_residual_block.1
$region0: #{simple_residual_block.1}
  #allocation0 [shape = 'u32[]', space=smem, size = 0x4, offset = 0x4, fixed_abs, tag = 'smem constant byte address 0x4 - core index']
  #allocation1 [shape = 'u32[72,128]{1,0:T(1,128)}', space=vmem, size = 0x9000, scoped, tag = 'internal scratch']
  %s0 = inlined_call_operand.vmem [shape: f32[2,3,256], index: 0, kind: input, shape index: {}]
  %s1 = inlined_call_operand.vmem [shape: f32[9,1,256], index: 1, kind: input, shape index: {}]
  %s2 = inlined_call_operand.vmem [shape: f32[9,3,3,1], index: 2, kind: input, shape index: {}]
  %s3 = inlined_call_operand.vmem [shape: f32[3,1], index: 3, kind: input, shape index: {}]
  %s4 = inlined_call_operand.vmem [shape: f32[9,3,3,1], index: 4, kind: input, shape index: {}]
  %s5 = inlined_call_operand.vmem [shape: f32[3,1], index: 5, kind: input, shape index: {}]
  %s6 = inlined_call_operand.vmem [shape: f32[2,3,256], index: 6, kind: output, shape index: {}]
  %s7 = sld [smem:[#allocation0]]
  $region57: #{simple_residual_block.1} parent=0
    _
  %s9 = ssub.s32 1, %s7
  %s10 = scalar_select 0, %s9, %s7
  loop: start=0, step=1, limit=4
  $region2: #{simple_residual_block.1} parent=0 // loop_pre_header
    _
  $region3: #{simple_residual_block.1} parent=0 // loop_header
    %s12 = sphi 0, %s16
    %p13 = scmp.ge.s32.totalorder %s12, 4
    %s22 = sphi 0, %s24
    %s25 = sphi 0, %s22
    %s26 = sphi 0, %s25
    %s42 = sphi 0, %s26
    %s46 = sphi 0, %s46
    %s48 = sphi 0, %s46
    %s49 = sphi 0, %s48
    %s63 = sphi 0, %s49
    %s67 = sphi 0, %s67
    %s69 = sphi 0, %s67
    %s70 = sphi 0, %s69
    %s84 = sphi 0, %s70
    %s88 = sphi 0, %s88
    %s90 = sphi 0, %s88
    %s91 = sphi 0, %s90
    %s105 = sphi 0, %s91
    %s109 = sphi 0, %s109
    %s111 = sphi 0, %s109
    %s112 = sphi 0, %s111
    %s126 = sphi 0, %s112
    %s130 = sphi 0, %s130
    %s132 = sphi 0, %s130
    %s133 = sphi 0, %s132
    %s147 = sphi 0, %s133
    %s153 = sphi 0, %s155
    %s156 = sphi 0, %s153
    %s157 = sphi 0, %s156
    %s173 = sphi 0, %s157
  $region4: #{simple_residual_block.1} parent=0 // loop_header_branch
    %15 = sbr.rel (%p13) target = $region8
  $region5: #{simple_residual_block.1} parent=0 // loop_body
    %s17 = ssub.s32 %s12, 1
    %s18 = ssub.s32 %s12, 2
    %s19 = sadd.s32 %s12, 1
    %s20 = ssub.s32 %s12, %s19
    %p21 = scmp.eq.s32.totalorder %s20, 0
    %s23 = sadd.s32 %s22, 1
    %s24 = scalar_select %p21, %s22, %s23
    %p27 = pneg %p21
    %p28 = scmp.eq.s32.totalorder %s12, 1
    %p29 = por %p27, %p28
    %p30 = scmp.ne.s32.totalorder %s22, %s25
    %p31 = scmp.eq.s32.totalorder %s12, 0
    %p32 = por %p30, %p31
    %p33 = scmp.ne.s32.totalorder %s22, %s25
    %p34 = scmp.eq.s32.totalorder %s17, 1
    %p35 = por %p33, %p34
    %p36 = scmp.ne.s32.totalorder %s25, %s26
    %p37 = scmp.eq.s32.totalorder %s17, 0
    %p38 = por %p36, %p37
    %p39 = scmp.ne.s32.totalorder %s25, %s26
    %p40 = scmp.eq.s32.totalorder %s18, 1
    %p41 = por %p39, %p40
    %p43 = scmp.ne.s32.totalorder %s26, %s42
    %p44 = scmp.eq.s32.totalorder %s18, 0
    %p45 = por %p43, %p44
    %s47 = sadd.s32 %s46, 1
    %p50 = scmp.eq.s32.totalorder %s12, 1
    %p51 = scmp.ne.s32.totalorder %s46, %s48
    %p52 = scmp.eq.s32.totalorder %s12, 0
    %p53 = por %p51, %p52
    %p54 = scmp.ne.s32.totalorder %s46, %s48
    %p55 = scmp.eq.s32.totalorder %s17, 1
    %p56 = por %p54, %p55
    %p57 = scmp.ne.s32.totalorder %s48, %s49
    %p58 = scmp.eq.s32.totalorder %s17, 0
    %p59 = por %p57, %p58
    %p60 = scmp.ne.s32.totalorder %s48, %s49
    %p61 = scmp.eq.s32.totalorder %s18, 1
    %p62 = por %p60, %p61
    %p64 = scmp.ne.s32.totalorder %s49, %s63
    %p65 = scmp.eq.s32.totalorder %s18, 0
    %p66 = por %p64, %p65
    %s68 = sadd.s32 %s67, 1
    %p71 = scmp.eq.s32.totalorder %s12, 1
    %p72 = scmp.ne.s32.totalorder %s67, %s69
    %p73 = scmp.eq.s32.totalorder %s12, 0
    %p74 = por %p72, %p73
    %p75 = scmp.ne.s32.totalorder %s67, %s69
    %p76 = scmp.eq.s32.totalorder %s17, 1
    %p77 = por %p75, %p76
    %p78 = scmp.ne.s32.totalorder %s69, %s70
    %p79 = scmp.eq.s32.totalorder %s17, 0
    %p80 = por %p78, %p79
    %p81 = scmp.ne.s32.totalorder %s69, %s70
    %p82 = scmp.eq.s32.totalorder %s18, 1
    %p83 = por %p81, %p82
    %p85 = scmp.ne.s32.totalorder %s70, %s84
    %p86 = scmp.eq.s32.totalorder %s18, 0
    %p87 = por %p85, %p86
    %s89 = sadd.s32 %s88, 1
    %p92 = scmp.eq.s32.totalorder %s12, 1
    %p93 = scmp.ne.s32.totalorder %s88, %s90
    %p94 = scmp.eq.s32.totalorder %s12, 0
    %p95 = por %p93, %p94
    %p96 = scmp.ne.s32.totalorder %s88, %s90
    %p97 = scmp.eq.s32.totalorder %s17, 1
    %p98 = por %p96, %p97
    %p99 = scmp.ne.s32.totalorder %s90, %s91
    %p100 = scmp.eq.s32.totalorder %s17, 0
    %p101 = por %p99, %p100
    %p102 = scmp.ne.s32.totalorder %s90, %s91
    %p103 = scmp.eq.s32.totalorder %s18, 1
    %p104 = por %p102, %p103
    %p106 = scmp.ne.s32.totalorder %s91, %s105
    %p107 = scmp.eq.s32.totalorder %s18, 0
    %p108 = por %p106, %p107
    %s110 = sadd.s32 %s109, 1
    %p113 = scmp.eq.s32.totalorder %s12, 1
    %p114 = scmp.ne.s32.totalorder %s109, %s111
    %p115 = scmp.eq.s32.totalorder %s12, 0
    %p116 = por %p114, %p115
    %p117 = scmp.ne.s32.totalorder %s109, %s111
    %p118 = scmp.eq.s32.totalorder %s17, 1
    %p119 = por %p117, %p118
    %p120 = scmp.ne.s32.totalorder %s111, %s112
    %p121 = scmp.eq.s32.totalorder %s17, 0
    %p122 = por %p120, %p121
    %p123 = scmp.ne.s32.totalorder %s111, %s112
    %p124 = scmp.eq.s32.totalorder %s18, 1
    %p125 = por %p123, %p124
    %p127 = scmp.ne.s32.totalorder %s112, %s126
    %p128 = scmp.eq.s32.totalorder %s18, 0
    %p129 = por %p127, %p128
    %s131 = sadd.s32 %s130, 1
    %p134 = scmp.eq.s32.totalorder %s12, 1
    %p135 = scmp.ne.s32.totalorder %s130, %s132
    %p136 = scmp.eq.s32.totalorder %s12, 0
    %p137 = por %p135, %p136
    %p138 = scmp.ne.s32.totalorder %s130, %s132
    %p139 = scmp.eq.s32.totalorder %s17, 1
    %p140 = por %p138, %p139
    %p141 = scmp.ne.s32.totalorder %s132, %s133
    %p142 = scmp.eq.s32.totalorder %s17, 0
    %p143 = por %p141, %p142
    %p144 = scmp.ne.s32.totalorder %s132, %s133
    %p145 = scmp.eq.s32.totalorder %s18, 1
    %p146 = por %p144, %p145
    %p148 = scmp.ne.s32.totalorder %s133, %s147
    %p149 = scmp.eq.s32.totalorder %s18, 0
    %p150 = por %p148, %p149
    %s151 = ssub.s32 %s12, %s19
    %p152 = scmp.eq.s32.totalorder %s151, 0
    %s154 = sadd.s32 %s153, 1
    %s155 = scalar_select %p152, %s153, %s154
    %p158 = pneg %p152
    %p159 = scmp.eq.s32.totalorder %s12, 1
    %p160 = por %p158, %p159
    %p161 = scmp.ne.s32.totalorder %s153, %s156
    %p162 = scmp.eq.s32.totalorder %s12, 0
    %p163 = por %p161, %p162
    %p164 = scmp.ne.s32.totalorder %s153, %s156
    %p165 = scmp.eq.s32.totalorder %s17, 1
    %p166 = por %p164, %p165
    %p167 = scmp.ne.s32.totalorder %s156, %s157
    %p168 = scmp.eq.s32.totalorder %s17, 0
    %p169 = por %p167, %p168
    %p170 = scmp.ne.s32.totalorder %s156, %s157
    %p171 = scmp.eq.s32.totalorder %s18, 1
    %p172 = por %p170, %p171
    %p174 = scmp.ne.s32.totalorder %s157, %s173
    %p175 = scmp.eq.s32.totalorder %s18, 0
    %p176 = por %p174, %p175
    %p177 = scmp.le.s32.totalorder 1, %s12
    %p178 = scmp.lt.s32.totalorder %s12, 3
    %p179 = pnand %p177, %p178
    %p180 = pneg %p179
    // Predicated region
    $region9: #{simple_residual_block.1} parent=5 // pred_check
      _
    $region10: #{simple_residual_block.1} parent=5 // pred_check_branch
      %182 = sbr.rel (%p179) target = $region12
    $region11: #{simple_residual_block.1} parent=5 // pred_region
      %s183 = ssub.s32 %s12, 1
      // Predicated region
      $region13: #{simple_residual_block.1} parent=11 // pred_check
        %p184 = pneg %p59
      $region14: #{simple_residual_block.1} parent=11 // pred_check_branch
        %186 = sbr.rel (%p184) target = $region16
      $region15: #{simple_residual_block.1} parent=11 // pred_region
        _
      $region16: #{simple_residual_block.1} parent=11 // pred_fallthru
        _
      // Predicated region
      $region17: #{simple_residual_block.1} parent=11 // pred_check
        %p187 = pneg %p80
      $region18: #{simple_residual_block.1} parent=11 // pred_check_branch
        %189 = sbr.rel (%p187) target = $region20
      $region19: #{simple_residual_block.1} parent=11 // pred_region
        _
      $region20: #{simple_residual_block.1} parent=11 // pred_fallthru
        _
      // Predicated region
      $region21: #{simple_residual_block.1} parent=11 // pred_check
        %p190 = pneg %p101
      $region22: #{simple_residual_block.1} parent=11 // pred_check_branch
        %192 = sbr.rel (%p190) target = $region24
      $region23: #{simple_residual_block.1} parent=11 // pred_region
        _
      $region24: #{simple_residual_block.1} parent=11 // pred_fallthru
        _
      // Predicated region
      $region25: #{simple_residual_block.1} parent=11 // pred_check
        %p193 = pneg %p122
      $region26: #{simple_residual_block.1} parent=11 // pred_check_branch
        %195 = sbr.rel (%p193) target = $region28
      $region27: #{simple_residual_block.1} parent=11 // pred_region
        _
      $region28: #{simple_residual_block.1} parent=11 // pred_fallthru
        _
      // Predicated region
      $region29: #{simple_residual_block.1} parent=11 // pred_check
        %p196 = pneg %p143
      $region30: #{simple_residual_block.1} parent=11 // pred_check_branch
        %198 = sbr.rel (%p196) target = $region32
      $region31: #{simple_residual_block.1} parent=11 // pred_region
        _
      $region32: #{simple_residual_block.1} parent=11 // pred_fallthru
        _
    $region12: #{simple_residual_block.1} parent=5 // pred_fallthru
      _
    %p199 = scmp.lt.s32.totalorder %s12, 2
    // Predicated region
    $region33: #{simple_residual_block.1} parent=5 // pred_check
      %p200 = pneg %p199
    $region34: #{simple_residual_block.1} parent=5 // pred_check_branch
      %202 = sbr.rel (%p200) target = $region36
    $region35: #{simple_residual_block.1} parent=5 // pred_region
      // Predicated region
      $region37: #{simple_residual_block.1} parent=35 // pred_check
        %p203 = pneg %p32
      $region38: #{simple_residual_block.1} parent=35 // pred_check_branch
        %205 = sbr.rel (%p203) target = $region40
      $region39: #{simple_residual_block.1} parent=35 // pred_region
        %p206 = scmp.lt.s32.totalorder %s12, 1
        %s207 = scalar_select %p206, %s12, 1
        %s208 = smul.addr %s207, 2
        %s209 = smul.addr %s208, 4
        %s210 = scalar_lea.vmem %s0, %s209
      $region40: #{simple_residual_block.1} parent=35 // pred_fallthru
        _
    $region36: #{simple_residual_block.1} parent=5 // pred_fallthru
      _
    %p211 = scmp.le.s32.totalorder 1, %s12
    %p212 = scmp.lt.s32.totalorder %s12, 3
    %p213 = pnand %p211, %p212
    %p214 = pneg %p213
    // Predicated region
    $region41: #{simple_residual_block.1} parent=5 // pred_check
      _
    $region42: #{simple_residual_block.1} parent=5 // pred_check_branch
      %216 = sbr.rel (%p213) target = $region44
    $region43: #{simple_residual_block.1} parent=5 // pred_region
      %s217 = ssub.s32 %s12, 1
      %p218 = scmp.lt.s32.totalorder %s17, 1
      %s219 = scalar_select %p218, %s17, 1
      %s220 = smul.addr %s219, 2
      %s221 = smul.addr %s220, 4
      %s222 = scalar_lea.vmem %s0, %s221
      %p223 = pneg %p38
      %p224 = pneg %p35
      %p225 = pneg %p59
      %p226 = pneg %p56
      %p227 = pneg %p80
      %p228 = pneg %p77
      %p229 = pneg %p101
      %p230 = pneg %p98
      %p231 = pneg %p122
      %p232 = pneg %p119
      %p233 = pneg %p143
      %p234 = pneg %p140
      %p235 = pneg %p169
      %p236 = pneg %p166
      %p237 = scmp.lt.s32.totalorder %s17, 1
      %s238 = scalar_select %p237, %s17, 1
      %s239 = smul.addr %s238, 2
      %s240 = smul.addr %s239, 4
      %s241 = scalar_lea.vmem %s6, %s240
      %p242 = scmp.lt.s32.totalorder %s17, 1
      %s243 = scalar_select %p242, %s17, 1
      %s244 = smul.addr %s243, 2
      %s245 = smul.addr %s244, 4
      %s246 = scalar_lea.vmem %s0, %s245
      %p247 = scmp.lt.s32.totalorder %s17, 1
      %s248 = scalar_select %p247, %s17, 1
      %s249 = smul.addr %s248, 2
      %s250 = smul.addr %s249, 4
      %s251 = scalar_lea.vmem %s6, %s250
      %v252 = vld [vmem:[%s246] sm:$0x77]
      %v253 = vld [vmem:[%s1] sm:$0x3]
      %s254 = scalar_lea.vmem %s1, 2
      %v255 = vld [vmem:[%s254] sm:$0x3]
      %s256 = scalar_lea.vmem %s1, 4
      %v257 = vld [vmem:[%s256] sm:$0x3]
      %s258 = scalar_lea.vmem %s1, 6
      %v259 = vld [vmem:[%s258] sm:$0x3]
      %s260 = scalar_lea.vmem %s1, 10
      %v261 = vld [vmem:[%s260] sm:$0x3]
      %s262 = scalar_lea.vmem %s1, 12
      %v263 = vld [vmem:[%s262] sm:$0x3]
      %s264 = scalar_lea.vmem %s1, 14
      %v265 = vld [vmem:[%s264] sm:$0x3]
      %s266 = scalar_lea.vmem %s1, 16
      %v267 = vld [vmem:[%s266] sm:$0x3]
      %269 = vst [vmem:[#allocation1] ss:$2 sm:$0xff] %v252
      %v270 = vld.sshfl [vmem:[#allocation1] sm:$0xff pattern:$0x75316420]
      %v271 = vld.sshfl [vmem:[#allocation1 + $0x8] sm:$0xff pattern:$0x75316420]
      %274 = vrot.lane.b32.xlu0 %v270, 17
      %v275 = vpop.permute.xlu0 %274
      %276 = vrot.lane.b32.xlu0 %v271, 17
      %v277 = vpop.permute.xlu0 %276
      %v278 = vlaneseq
      %v279 = vand.u32 %v278, 127
      %vm280 = vcmp.lt.s32.totalorder %v279, 17
      %v281 = vsel %vm280, %v275, %v277
      %v282 = vsel %vm280, %v277, %v275
      %v284 = vperm.slane %v253, 0
      %v285 = vperm.slane %v253, 1
      %v288 = vmul.f32 %v282, %v284
      %v289 = vmul.f32 %v281, %v285
      %v290 = vld [vmem:[%s2] sm:$0x7]
      %292 = vset.pattern.permute.xlu0 0
      %293 = vperm.xlu0 %292, %v290
      %v294 = vpop.permute.xlu0 %293
      %v296 = vperm.slane %v288, 0
      %v297 = vperm.slane %v289, 0
      %v298 = vmul.f32 %v294, %v296
      %v299 = vmul.f32 %v294, %v297
      %v300 = vadd.f32 %v298, 0.0
      %v301 = vadd.f32 %v299, 0.0
      %s302 = scalar_lea.vmem %s2, 4
      %v303 = vld [vmem:[%s302] sm:$0x7]
      %305 = vset.pattern.permute.xlu0 0
      %306 = vperm.xlu0 %305, %v303
      %v307 = vpop.permute.xlu0 %306
      %v309 = vperm.slane %v288, 1
      %v310 = vperm.slane %v289, 1
      %v311 = vmul.f32 %v307, %v309
      %v312 = vmul.f32 %v307, %v310
      %v313 = vadd.f32 %v300, %v311
      %v314 = vadd.f32 %v301, %v312
      %s315 = scalar_lea.vmem %s2, 8
      %v316 = vld [vmem:[%s315] sm:$0x7]
      %318 = vset.pattern.permute.xlu0 0
      %319 = vperm.xlu0 %318, %v316
      %v320 = vpop.permute.xlu0 %319
      %v322 = vperm.slane %v288, 2
      %v323 = vperm.slane %v289, 2
      %v324 = vmul.f32 %v320, %v322
      %v325 = vmul.f32 %v320, %v323
      %v326 = vadd.f32 %v313, %v324
      %v327 = vadd.f32 %v314, %v325
      %328 = vst [vmem:[#allocation1] ss:$2 sm:$0xff] %v252
      %v329 = vld.sshfl [vmem:[#allocation1] sm:$0xff pattern:$0x75316420]
      %v330 = vld.sshfl [vmem:[#allocation1 + $0x8] sm:$0xff pattern:$0x75316420]
      %333 = vrot.lane.b32.xlu0 %v329, 16
      %v334 = vpop.permute.xlu0 %333
      %335 = vrot.lane.b32.xlu0 %v330, 16
      %v336 = vpop.permute.xlu0 %335
      %vm337 = vcmp.lt.s32.totalorder %v279, 16
      %v338 = vsel %vm337, %v334, %v336
      %v339 = vsel %vm337, %v336, %v334
      %v341 = vperm.slane %v255, 0
      %v342 = vperm.slane %v255, 1
      %v345 = vmul.f32 %v339, %v341
      %v346 = vmul.f32 %v338, %v342
      %s347 = scalar_lea.vmem %s2, 12
      %v348 = vld [vmem:[%s347] sm:$0x7]
      %350 = vset.pattern.permute.xlu0 0
      %351 = vperm.xlu0 %350, %v348
      %v352 = vpop.permute.xlu0 %351
      %v354 = vperm.slane %v345, 0
      %v355 = vperm.slane %v346, 0
      %v356 = vmul.f32 %v352, %v354
      %v357 = vmul.f32 %v352, %v355
      %v358 = vadd.f32 %v326, %v356
      %v359 = vadd.f32 %v327, %v357
      %s360 = scalar_lea.vmem %s2, 16
      %v361 = vld [vmem:[%s360] sm:$0x7]
      %363 = vset.pattern.permute.xlu0 0
      %364 = vperm.xlu0 %363, %v361
      %v365 = vpop.permute.xlu0 %364
      %v367 = vperm.slane %v345, 1
      %v368 = vperm.slane %v346, 1
      %v369 = vmul.f32 %v365, %v367
      %v370 = vmul.f32 %v365, %v368
      %v371 = vadd.f32 %v358, %v369
      %v372 = vadd.f32 %v359, %v370
      %s373 = scalar_lea.vmem %s2, 20
      %v374 = vld [vmem:[%s373] sm:$0x7]
      %376 = vset.pattern.permute.xlu0 0
      %377 = vperm.xlu0 %376, %v374
      %v378 = vpop.permute.xlu0 %377
      %v380 = vperm.slane %v345, 2
      %v381 = vperm.slane %v346, 2
      %v382 = vmul.f32 %v378, %v380
      %v383 = vmul.f32 %v378, %v381
      %v384 = vadd.f32 %v371, %v382
      %v385 = vadd.f32 %v372, %v383
      %386 = vst [vmem:[#allocation1] ss:$2 sm:$0xff] %v252
      %v387 = vld.sshfl [vmem:[#allocation1] sm:$0xff pattern:$0x75316420]
      %v388 = vld.sshfl [vmem:[#allocation1 + $0x8] sm:$0xff pattern:$0x75316420]
      %391 = vrot.lane.b32.xlu0 %v387, 15
      %v392 = vpop.permute.xlu0 %391
      %393 = vrot.lane.b32.xlu0 %v388, 15
      %v394 = vpop.permute.xlu0 %393
      %vm395 = vcmp.lt.s32.totalorder %v279, 15
      %v396 = vsel %vm395, %v392, %v394
      %v397 = vsel %vm395, %v394, %v392
      %v399 = vperm.slane %v257, 0
      %v400 = vperm.slane %v257, 1
      %v403 = vmul.f32 %v397, %v399
      %v404 = vmul.f32 %v396, %v400
      %s405 = scalar_lea.vmem %s2, 24
      %v406 = vld [vmem:[%s405] sm:$0x7]
      %408 = vset.pattern.permute.xlu0 0
      %409 = vperm.xlu0 %408, %v406
      %v410 = vpop.permute.xlu0 %409
      %v412 = vperm.slane %v403, 0
      %v413 = vperm.slane %v404, 0
      %v414 = vmul.f32 %v410, %v412
      %v415 = vmul.f32 %v410, %v413
      %v416 = vadd.f32 %v384, %v414
      %v417 = vadd.f32 %v385, %v415
      %s418 = scalar_lea.vmem %s2, 28
      %v419 = vld [vmem:[%s418] sm:$0x7]
      %421 = vset.pattern.permute.xlu0 0
      %422 = vperm.xlu0 %421, %v419
      %v423 = vpop.permute.xlu0 %422
      %v425 = vperm.slane %v403, 1
      %v426 = vperm.slane %v404, 1
      %v427 = vmul.f32 %v423, %v425
      %v428 = vmul.f32 %v423, %v426
      %v429 = vadd.f32 %v416, %v427
      %v430 = vadd.f32 %v417, %v428
      %s431 = scalar_lea.vmem %s2, 32
      %v432 = vld [vmem:[%s431] sm:$0x7]
      %434 = vset.pattern.permute.xlu0 0
      %435 = vperm.xlu0 %434, %v432
      %v436 = vpop.permute.xlu0 %435
      %v438 = vperm.slane %v403, 2
      %v439 = vperm.slane %v404, 2
      %v440 = vmul.f32 %v436, %v438
      %v441 = vmul.f32 %v436, %v439
      %v442 = vadd.f32 %v429, %v440
      %v443 = vadd.f32 %v430, %v441
      %444 = vst [vmem:[#allocation1] ss:$2 sm:$0xff] %v252
      %v445 = vld.sshfl [vmem:[#allocation1] sm:$0xff pattern:$0x75316420]
      %v446 = vld.sshfl [vmem:[#allocation1 + $0x8] sm:$0xff pattern:$0x75316420]
      %449 = vrot.lane.b32.xlu0 %v445, 1
      %v450 = vpop.permute.xlu0 %449
      %451 = vrot.lane.b32.xlu0 %v446, 1
      %v452 = vpop.permute.xlu0 %451
      %vm453 = vcmp.lt.s32.totalorder %v279, 1
      %v454 = vsel %vm453, %v450, %v452
      %v455 = vsel %vm453, %v452, %v450
      %v457 = vperm.slane %v259, 0
      %v458 = vperm.slane %v259, 1
      %v461 = vmul.f32 %v455, %v457
      %v462 = vmul.f32 %v454, %v458
      %s463 = scalar_lea.vmem %s2, 36
      %v464 = vld [vmem:[%s463] sm:$0x7]
      %466 = vset.pattern.permute.xlu0 0
      %467 = vperm.xlu0 %466, %v464
      %v468 = vpop.permute.xlu0 %467
      %v470 = vperm.slane %v461, 0
      %v471 = vperm.slane %v462, 0
      %v472 = vmul.f32 %v468, %v470
      %v473 = vmul.f32 %v468, %v471
      %v474 = vadd.f32 %v442, %v472
      %v475 = vadd.f32 %v443, %v473
      %s476 = scalar_lea.vmem %s2, 40
      %v477 = vld [vmem:[%s476] sm:$0x7]
      %479 = vset.pattern.permute.xlu0 0
      %480 = vperm.xlu0 %479, %v477
      %v481 = vpop.permute.xlu0 %480
      %v483 = vperm.slane %v461, 1
      %v484 = vperm.slane %v462, 1
      %v485 = vmul.f32 %v481, %v483
      %v486 = vmul.f32 %v481, %v484
      %v487 = vadd.f32 %v474, %v485
      %v488 = vadd.f32 %v475, %v486
      %s489 = scalar_lea.vmem %s2, 44
      %v490 = vld [vmem:[%s489] sm:$0x7]
      %492 = vset.pattern.permute.xlu0 0
      %493 = vperm.xlu0 %492, %v490
      %v494 = vpop.permute.xlu0 %493
      %v496 = vperm.slane %v461, 2
      %v497 = vperm.slane %v462, 2
      %v498 = vmul.f32 %v494, %v496
      %v499 = vmul.f32 %v494, %v497
      %v500 = vadd.f32 %v487, %v498
      %v501 = vadd.f32 %v488, %v499
      %s502 = scalar_lea.vmem %s2, 48
      %v503 = vld [vmem:[%s502] sm:$0x7]
      %505 = vset.pattern.permute.xlu0 0
      %506 = vperm.xlu0 %505, %v503
      %v507 = vpop.permute.xlu0 %506
      %v509 = vperm.slane %v252, 0
      %v510 = vperm.slane %v252, 4
      %v513 = vperm.slane %v509, 0
      %v514 = vperm.slane %v510, 0
      %v515 = vmul.f32 %v507, %v513
      %v516 = vmul.f32 %v507, %v514
      %v517 = vadd.f32 %v500, %v515
      %v518 = vadd.f32 %v501, %v516
      %s519 = scalar_lea.vmem %s2, 52
      %v520 = vld [vmem:[%s519] sm:$0x7]
      %522 = vset.pattern.permute.xlu0 0
      %523 = vperm.xlu0 %522, %v520
      %v524 = vpop.permute.xlu0 %523
      %v526 = vperm.slane %v252, 1
      %v527 = vperm.slane %v252, 5
      %v530 = vperm.slane %v526, 1
      %v531 = vperm.slane %v527, 1
      %v532 = vmul.f32 %v524, %v530
      %v533 = vmul.f32 %v524, %v531
      %v534 = vadd.f32 %v517, %v532
      %v535 = vadd.f32 %v518, %v533
      %s536 = scalar_lea.vmem %s2, 56
      %v537 = vld [vmem:[%s536] sm:$0x7]
      %539 = vset.pattern.permute.xlu0 0
      %540 = vperm.xlu0 %539, %v537
      %v541 = vpop.permute.xlu0 %540
      %v543 = vperm.slane %v252, 2
      %v544 = vperm.slane %v252, 6
      %v547 = vperm.slane %v543, 2
      %v548 = vperm.slane %v544, 2
      %v549 = vmul.f32 %v541, %v547
      %v550 = vmul.f32 %v541, %v548
      %v551 = vadd.f32 %v534, %v549
      %v552 = vadd.f32 %v535, %v550
      %553 = vst [vmem:[#allocation1] ss:$2 sm:$0xff] %v252
      %v554 = vld.sshfl [vmem:[#allocation1] sm:$0xff pattern:$0x75316420]
      %v555 = vld.sshfl [vmem:[#allocation1 + $0x8] sm:$0xff pattern:$0x75316420]
      %558 = vrot.lane.b32.xlu0 %v554, 127
      %v559 = vpop.permute.xlu0 %558
      %560 = vrot.lane.b32.xlu0 %v555, 127
      %v561 = vpop.permute.xlu0 %560
      %vm562 = vcmp.lt.s32.totalorder %v279, 127
      %v563 = vsel %vm562, %v559, %v561
      %v564 = vsel %vm562, %v561, %v559
      %v566 = vperm.slane %v261, 0
      %v567 = vperm.slane %v261, 1
      %v570 = vmul.f32 %v563, %v566
      %v571 = vmul.f32 %v564, %v567
      %s572 = scalar_lea.vmem %s2, 60
      %v573 = vld [vmem:[%s572] sm:$0x7]
      %575 = vset.pattern.permute.xlu0 0
      %576 = vperm.xlu0 %575, %v573
      %v577 = vpop.permute.xlu0 %576
      %v579 = vperm.slane %v570, 0
      %v580 = vperm.slane %v571, 0
      %v581 = vmul.f32 %v577, %v579
      %v582 = vmul.f32 %v577, %v580
      %v583 = vadd.f32 %v551, %v581
      %v584 = vadd.f32 %v552, %v582
      %s585 = scalar_lea.vmem %s2, 64
      %v586 = vld [vmem:[%s585] sm:$0x7]
      %588 = vset.pattern.permute.xlu0 0
      %589 = vperm.xlu0 %588, %v586
      %v590 = vpop.permute.xlu0 %589
      %v592 = vperm.slane %v570, 1
      %v593 = vperm.slane %v571, 1
      %v594 = vmul.f32 %v590, %v592
      %v595 = vmul.f32 %v590, %v593
      %v596 = vadd.f32 %v583, %v594
      %v597 = vadd.f32 %v584, %v595
      %s598 = scalar_lea.vmem %s2, 68
      %v599 = vld [vmem:[%s598] sm:$0x7]
      %601 = vset.pattern.permute.xlu0 0
      %602 = vperm.xlu0 %601, %v599
      %v603 = vpop.permute.xlu0 %602
      %v605 = vperm.slane %v570, 2
      %v606 = vperm.slane %v571, 2
      %v607 = vmul.f32 %v603, %v605
      %v608 = vmul.f32 %v603, %v606
      %v609 = vadd.f32 %v596, %v607
      %v610 = vadd.f32 %v597, %v608
      %611 = vst [vmem:[#allocation1] ss:$2 sm:$0xff] %v252
      %v612 = vld.sshfl [vmem:[#allocation1] sm:$0xff pattern:$0x75316420]
      %v613 = vld.sshfl [vmem:[#allocation1 + $0x8] sm:$0xff pattern:$0x75316420]
      %616 = vrot.lane.b32.xlu0 %v612, 113
      %v617 = vpop.permute.xlu0 %616
      %618 = vrot.lane.b32.xlu0 %v613, 113
      %v619 = vpop.permute.xlu0 %618
      %vm620 = vcmp.lt.s32.totalorder %v279, 113
      %v621 = vsel %vm620, %v617, %v619
      %v622 = vsel %vm620, %v619, %v617
      %v624 = vperm.slane %v263, 0
      %v625 = vperm.slane %v263, 1
      %v628 = vmul.f32 %v621, %v624
      %v629 = vmul.f32 %v622, %v625
      %s630 = scalar_lea.vmem %s2, 72
      %v631 = vld [vmem:[%s630] sm:$0x7]
      %633 = vset.pattern.permute.xlu0 0
      %634 = vperm.xlu0 %633, %v631
      %v635 = vpop.permute.xlu0 %634
      %v637 = vperm.slane %v628, 0
      %v638 = vperm.slane %v629, 0
      %v639 = vmul.f32 %v635, %v637
      %v640 = vmul.f32 %v635, %v638
      %v641 = vadd.f32 %v609, %v639
      %v642 = vadd.f32 %v610, %v640
      %s643 = scalar_lea.vmem %s2, 76
      %v644 = vld [vmem:[%s643] sm:$0x7]
      %646 = vset.pattern.permute.xlu0 0
      %647 = vperm.xlu0 %646, %v644
      %v648 = vpop.permute.xlu0 %647
      %v650 = vperm.slane %v628, 1
      %v651 = vperm.slane %v629, 1
      %v652 = vmul.f32 %v648, %v650
      %v653 = vmul.f32 %v648, %v651
      %v654 = vadd.f32 %v641, %v652
      %v655 = vadd.f32 %v642, %v653
      %s656 = scalar_lea.vmem %s2, 80
      %v657 = vld [vmem:[%s656] sm:$0x7]
      %659 = vset.pattern.permute.xlu0 0
      %660 = vperm.xlu0 %659, %v657
      %v661 = vpop.permute.xlu0 %660
      %v663 = vperm.slane %v628, 2
      %v664 = vperm.slane %v629, 2
      %v665 = vmul.f32 %v661, %v663
      %v666 = vmul.f32 %v661, %v664
      %v667 = vadd.f32 %v654, %v665
      %v668 = vadd.f32 %v655, %v666
      %669 = vst [vmem:[#allocation1] ss:$2 sm:$0xff] %v252
      %v670 = vld.sshfl [vmem:[#allocation1] sm:$0xff pattern:$0x75316420]
      %v671 = vld.sshfl [vmem:[#allocation1 + $0x8] sm:$0xff pattern:$0x75316420]
      %674 = vrot.lane.b32.xlu0 %v670, 112
      %v675 = vpop.permute.xlu0 %674
      %676 = vrot.lane.b32.xlu0 %v671, 112
      %v677 = vpop.permute.xlu0 %676
      %vm678 = vcmp.lt.s32.totalorder %v279, 112
      %v679 = vsel %vm678, %v675, %v677
      %v680 = vsel %vm678, %v677, %v675
      %v682 = vperm.slane %v265, 0
      %v683 = vperm.slane %v265, 1
      %v686 = vmul.f32 %v679, %v682
      %v687 = vmul.f32 %v680, %v683
      %s688 = scalar_lea.vmem %s2, 84
      %v689 = vld [vmem:[%s688] sm:$0x7]
      %691 = vset.pattern.permute.xlu0 0
      %692 = vperm.xlu0 %691, %v689
      %v693 = vpop.permute.xlu0 %692
      %v695 = vperm.slane %v686, 0
      %v696 = vperm.slane %v687, 0
      %v697 = vmul.f32 %v693, %v695
      %v698 = vmul.f32 %v693, %v696
      %v699 = vadd.f32 %v667, %v697
      %v700 = vadd.f32 %v668, %v698
      %s701 = scalar_lea.vmem %s2, 88
      %v702 = vld [vmem:[%s701] sm:$0x7]
      %704 = vset.pattern.permute.xlu0 0
      %705 = vperm.xlu0 %704, %v702
      %v706 = vpop.permute.xlu0 %705
      %v708 = vperm.slane %v686, 1
      %v709 = vperm.slane %v687, 1
      %v710 = vmul.f32 %v706, %v708
      %v711 = vmul.f32 %v706, %v709
      %v712 = vadd.f32 %v699, %v710
      %v713 = vadd.f32 %v700, %v711
      %s714 = scalar_lea.vmem %s2, 92
      %v715 = vld [vmem:[%s714] sm:$0x7]
      %717 = vset.pattern.permute.xlu0 0
      %718 = vperm.xlu0 %717, %v715
      %v719 = vpop.permute.xlu0 %718
      %v721 = vperm.slane %v686, 2
      %v722 = vperm.slane %v687, 2
      %v723 = vmul.f32 %v719, %v721
      %v724 = vmul.f32 %v719, %v722
      %v725 = vadd.f32 %v712, %v723
      %v726 = vadd.f32 %v713, %v724
      %727 = vst [vmem:[#allocation1] ss:$2 sm:$0xff] %v252
      %v728 = vld.sshfl [vmem:[#allocation1] sm:$0xff pattern:$0x75316420]
      %v729 = vld.sshfl [vmem:[#allocation1 + $0x8] sm:$0xff pattern:$0x75316420]
      %732 = vrot.lane.b32.xlu0 %v728, 111
      %v733 = vpop.permute.xlu0 %732
      %734 = vrot.lane.b32.xlu0 %v729, 111
      %v735 = vpop.permute.xlu0 %734
      %vm736 = vcmp.lt.s32.totalorder %v279, 111
      %v737 = vsel %vm736, %v733, %v735
      %v738 = vsel %vm736, %v735, %v733
      %v740 = vperm.slane %v267, 0
      %v741 = vperm.slane %v267, 1
      %v744 = vmul.f32 %v737, %v740
      %v745 = vmul.f32 %v738, %v741
      %s746 = scalar_lea.vmem %s2, 96
      %v747 = vld [vmem:[%s746] sm:$0x7]
      %749 = vset.pattern.permute.xlu0 0
      %750 = vperm.xlu0 %749, %v747
      %v751 = vpop.permute.xlu0 %750
      %v753 = vperm.slane %v744, 0
      %v754 = vperm.slane %v745, 0
      %v755 = vmul.f32 %v751, %v753
      %v756 = vmul.f32 %v751, %v754
      %v757 = vadd.f32 %v725, %v755
      %v758 = vadd.f32 %v726, %v756
      %s759 = scalar_lea.vmem %s2, 100
      %v760 = vld [vmem:[%s759] sm:$0x7]
      %762 = vset.pattern.permute.xlu0 0
      %763 = vperm.xlu0 %762, %v760
      %v764 = vpop.permute.xlu0 %763
      %v766 = vperm.slane %v744, 1
      %v767 = vperm.slane %v745, 1
      %v768 = vmul.f32 %v764, %v766
      %v769 = vmul.f32 %v764, %v767
      %v770 = vadd.f32 %v757, %v768
      %v771 = vadd.f32 %v758, %v769
      %s772 = scalar_lea.vmem %s2, 104
      %v773 = vld [vmem:[%s772] sm:$0x7]
      %775 = vset.pattern.permute.xlu0 0
      %776 = vperm.xlu0 %775, %v773
      %v777 = vpop.permute.xlu0 %776
      %v779 = vperm.slane %v744, 2
      %v780 = vperm.slane %v745, 2
      %v781 = vmul.f32 %v777, %v779
      %v782 = vmul.f32 %v777, %v780
      %v783 = vadd.f32 %v770, %v781
      %v784 = vadd.f32 %v771, %v782
      %v785 = vld [vmem:[%s3] sm:$0x7]
      %787 = vset.pattern.permute.xlu0 0
      %788 = vperm.xlu0 %787, %v785
      %v789 = vpop.permute.xlu0 %788
      %v791 = vadd.f32 %v783, %v789
      %v792 = vadd.f32 %v784, %v789
      %v793 = vmax.f32 %v791, 0.0
      %v794 = vmax.f32 %v792, 0.0
      %795 = vrot.lane.b32.xlu0 %v793, 17
      %v796 = vpop.permute.xlu0 %795
      %797 = vrot.lane.b32.xlu0 %v794, 17
      %v798 = vpop.permute.xlu0 %797
      %v799 = vsel %vm280, %v796, %v798
      %v800 = vsel %vm280, %v798, %v796
      %v801 = vmul.f32 %v800, %v284
      %v802 = vmul.f32 %v799, %v285
      %v803 = vld [vmem:[%s4] sm:$0x7]
      %805 = vset.pattern.permute.xlu0 0
      %806 = vperm.xlu0 %805, %v803
      %v807 = vpop.permute.xlu0 %806
      %v809 = vperm.slane %v801, 0
      %v810 = vperm.slane %v802, 0
      %v811 = vmul.f32 %v807, %v809
      %v812 = vmul.f32 %v807, %v810
      %v813 = vadd.f32 %v811, 0.0
      %v814 = vadd.f32 %v812, 0.0
      %s815 = scalar_lea.vmem %s4, 4
      %v816 = vld [vmem:[%s815] sm:$0x7]
      %818 = vset.pattern.permute.xlu0 0
      %819 = vperm.xlu0 %818, %v816
      %v820 = vpop.permute.xlu0 %819
      %v822 = vperm.slane %v801, 1
      %v823 = vperm.slane %v802, 1
      %v824 = vmul.f32 %v820, %v822
      %v825 = vmul.f32 %v820, %v823
      %v826 = vadd.f32 %v813, %v824
      %v827 = vadd.f32 %v814, %v825
      %s828 = scalar_lea.vmem %s4, 8
      %v829 = vld [vmem:[%s828] sm:$0x7]
      %831 = vset.pattern.permute.xlu0 0
      %832 = vperm.xlu0 %831, %v829
      %v833 = vpop.permute.xlu0 %832
      %v835 = vperm.slane %v801, 2
      %v836 = vperm.slane %v802, 2
      %v837 = vmul.f32 %v833, %v835
      %v838 = vmul.f32 %v833, %v836
      %v839 = vadd.f32 %v826, %v837
      %v840 = vadd.f32 %v827, %v838
      %841 = vrot.lane.b32.xlu0 %v793, 16
      %v842 = vpop.permute.xlu0 %841
      %843 = vrot.lane.b32.xlu0 %v794, 16
      %v844 = vpop.permute.xlu0 %843
      %v845 = vsel %vm337, %v842, %v844
      %v846 = vsel %vm337, %v844, %v842
      %v847 = vmul.f32 %v846, %v341
      %v848 = vmul.f32 %v845, %v342
      %s849 = scalar_lea.vmem %s4, 12
      %v850 = vld [vmem:[%s849] sm:$0x7]
      %852 = vset.pattern.permute.xlu0 0
      %853 = vperm.xlu0 %852, %v850
      %v854 = vpop.permute.xlu0 %853
      %v856 = vperm.slane %v847, 0
      %v857 = vperm.slane %v848, 0
      %v858 = vmul.f32 %v854, %v856
      %v859 = vmul.f32 %v854, %v857
      %v860 = vadd.f32 %v839, %v858
      %v861 = vadd.f32 %v840, %v859
      %s862 = scalar_lea.vmem %s4, 16
      %v863 = vld [vmem:[%s862] sm:$0x7]
      %865 = vset.pattern.permute.xlu0 0
      %866 = vperm.xlu0 %865, %v863
      %v867 = vpop.permute.xlu0 %866
      %v869 = vperm.slane %v847, 1
      %v870 = vperm.slane %v848, 1
      %v871 = vmul.f32 %v867, %v869
      %v872 = vmul.f32 %v867, %v870
      %v873 = vadd.f32 %v860, %v871
      %v874 = vadd.f32 %v861, %v872
      %s875 = scalar_lea.vmem %s4, 20
      %v876 = vld [vmem:[%s875] sm:$0x7]
      %878 = vset.pattern.permute.xlu0 0
      %879 = vperm.xlu0 %878, %v876
      %v880 = vpop.permute.xlu0 %879
      %v882 = vperm.slane %v847, 2
      %v883 = vperm.slane %v848, 2
      %v884 = vmul.f32 %v880, %v882
      %v885 = vmul.f32 %v880, %v883
      %v886 = vadd.f32 %v873, %v884
      %v887 = vadd.f32 %v874, %v885
      %888 = vrot.lane.b32.xlu0 %v793, 15
      %v889 = vpop.permute.xlu0 %888
      %890 = vrot.lane.b32.xlu0 %v794, 15
      %v891 = vpop.permute.xlu0 %890
      %v892 = vsel %vm395, %v889, %v891
      %v893 = vsel %vm395, %v891, %v889
      %v894 = vmul.f32 %v893, %v399
      %v895 = vmul.f32 %v892, %v400
      %s896 = scalar_lea.vmem %s4, 24
      %v897 = vld [vmem:[%s896] sm:$0x7]
      %899 = vset.pattern.permute.xlu0 0
      %900 = vperm.xlu0 %899, %v897
      %v901 = vpop.permute.xlu0 %900
      %v903 = vperm.slane %v894, 0
      %v904 = vperm.slane %v895, 0
      %v905 = vmul.f32 %v901, %v903
      %v906 = vmul.f32 %v901, %v904
      %v907 = vadd.f32 %v886, %v905
      %v908 = vadd.f32 %v887, %v906
      %s909 = scalar_lea.vmem %s4, 28
      %v910 = vld [vmem:[%s909] sm:$0x7]
      %912 = vset.pattern.permute.xlu0 0
      %913 = vperm.xlu0 %912, %v910
      %v914 = vpop.permute.xlu0 %913
      %v916 = vperm.slane %v894, 1
      %v917 = vperm.slane %v895, 1
      %v918 = vmul.f32 %v914, %v916
      %v919 = vmul.f32 %v914, %v917
      %v920 = vadd.f32 %v907, %v918
      %v921 = vadd.f32 %v908, %v919
      %s922 = scalar_lea.vmem %s4, 32
      %v923 = vld [vmem:[%s922] sm:$0x7]
      %925 = vset.pattern.permute.xlu0 0
      %926 = vperm.xlu0 %925, %v923
      %v927 = vpop.permute.xlu0 %926
      %v929 = vperm.slane %v894, 2
      %v930 = vperm.slane %v895, 2
      %v931 = vmul.f32 %v927, %v929
      %v932 = vmul.f32 %v927, %v930
      %v933 = vadd.f32 %v920, %v931
      %v934 = vadd.f32 %v921, %v932
      %935 = vrot.lane.b32.xlu0 %v793, 1
      %v936 = vpop.permute.xlu0 %935
      %937 = vrot.lane.b32.xlu0 %v794, 1
      %v938 = vpop.permute.xlu0 %937
      %v939 = vsel %vm453, %v936, %v938
      %v940 = vsel %vm453, %v938, %v936
      %v941 = vmul.f32 %v940, %v457
      %v942 = vmul.f32 %v939, %v458
      %s943 = scalar_lea.vmem %s4, 36
      %v944 = vld [vmem:[%s943] sm:$0x7]
      %946 = vset.pattern.permute.xlu0 0
      %947 = vperm.xlu0 %946, %v944
      %v948 = vpop.permute.xlu0 %947
      %v950 = vperm.slane %v941, 0
      %v951 = vperm.slane %v942, 0
      %v952 = vmul.f32 %v948, %v950
      %v953 = vmul.f32 %v948, %v951
      %v954 = vadd.f32 %v933, %v952
      %v955 = vadd.f32 %v934, %v953
      %s956 = scalar_lea.vmem %s4, 40
      %v957 = vld [vmem:[%s956] sm:$0x7]
      %959 = vset.pattern.permute.xlu0 0
      %960 = vperm.xlu0 %959, %v957
      %v961 = vpop.permute.xlu0 %960
      %v963 = vperm.slane %v941, 1
      %v964 = vperm.slane %v942, 1
      %v965 = vmul.f32 %v961, %v963
      %v966 = vmul.f32 %v961, %v964
      %v967 = vadd.f32 %v954, %v965
      %v968 = vadd.f32 %v955, %v966
      %s969 = scalar_lea.vmem %s4, 44
      %v970 = vld [vmem:[%s969] sm:$0x7]
      %972 = vset.pattern.permute.xlu0 0
      %973 = vperm.xlu0 %972, %v970
      %v974 = vpop.permute.xlu0 %973
      %v976 = vperm.slane %v941, 2
      %v977 = vperm.slane %v942, 2
      %v978 = vmul.f32 %v974, %v976
      %v979 = vmul.f32 %v974, %v977
      %v980 = vadd.f32 %v967, %v978
      %v981 = vadd.f32 %v968, %v979
      %s982 = scalar_lea.vmem %s4, 48
      %v983 = vld [vmem:[%s982] sm:$0x7]
      %985 = vset.pattern.permute.xlu0 0
      %986 = vperm.xlu0 %985, %v983
      %v987 = vpop.permute.xlu0 %986
      %v989 = vperm.slane %v793, 0
      %v990 = vperm.slane %v794, 0
      %v991 = vmul.f32 %v987, %v989
      %v992 = vmul.f32 %v987, %v990
      %v993 = vadd.f32 %v980, %v991
      %v994 = vadd.f32 %v981, %v992
      %s995 = scalar_lea.vmem %s4, 52
      %v996 = vld [vmem:[%s995] sm:$0x7]
      %998 = vset.pattern.permute.xlu0 0
      %999 = vperm.xlu0 %998, %v996
      %v1000 = vpop.permute.xlu0 %999
      %v1002 = vperm.slane %v793, 1
      %v1003 = vperm.slane %v794, 1
      %v1004 = vmul.f32 %v1000, %v1002
      %v1005 = vmul.f32 %v1000, %v1003
      %v1006 = vadd.f32 %v993, %v1004
      %v1007 = vadd.f32 %v994, %v1005
      %s1008 = scalar_lea.vmem %s4, 56
      %v1009 = vld [vmem:[%s1008] sm:$0x7]
      %1011 = vset.pattern.permute.xlu0 0
      %1012 = vperm.xlu0 %1011, %v1009
      %v1013 = vpop.permute.xlu0 %1012
      %v1015 = vperm.slane %v793, 2
      %v1016 = vperm.slane %v794, 2
      %v1017 = vmul.f32 %v1013, %v1015
      %v1018 = vmul.f32 %v1013, %v1016
      %v1019 = vadd.f32 %v1006, %v1017
      %v1020 = vadd.f32 %v1007, %v1018
      %1021 = vrot.lane.b32.xlu0 %v793, 127
      %v1022 = vpop.permute.xlu0 %1021
      %1023 = vrot.lane.b32.xlu0 %v794, 127
      %v1024 = vpop.permute.xlu0 %1023
      %v1025 = vsel %vm562, %v1022, %v1024
      %v1026 = vsel %vm562, %v1024, %v1022
      %v1027 = vmul.f32 %v1025, %v566
      %v1028 = vmul.f32 %v1026, %v567
      %s1029 = scalar_lea.vmem %s4, 60
      %v1030 = vld [vmem:[%s1029] sm:$0x7]
      %1032 = vset.pattern.permute.xlu0 0
      %1033 = vperm.xlu0 %1032, %v1030
      %v1034 = vpop.permute.xlu0 %1033
      %v1036 = vperm.slane %v1027, 0
      %v1037 = vperm.slane %v1028, 0
      %v1038 = vmul.f32 %v1034, %v1036
      %v1039 = vmul.f32 %v1034, %v1037
      %v1040 = vadd.f32 %v1019, %v1038
      %v1041 = vadd.f32 %v1020, %v1039
      %s1042 = scalar_lea.vmem %s4, 64
      %v1043 = vld [vmem:[%s1042] sm:$0x7]
      %1045 = vset.pattern.permute.xlu0 0
      %1046 = vperm.xlu0 %1045, %v1043
      %v1047 = vpop.permute.xlu0 %1046
      %v1049 = vperm.slane %v1027, 1
      %v1050 = vperm.slane %v1028, 1
      %v1051 = vmul.f32 %v1047, %v1049
      %v1052 = vmul.f32 %v1047, %v1050
      %v1053 = vadd.f32 %v1040, %v1051
      %v1054 = vadd.f32 %v1041, %v1052
      %s1055 = scalar_lea.vmem %s4, 68
      %v1056 = vld [vmem:[%s1055] sm:$0x7]
      %1058 = vset.pattern.permute.xlu0 0
      %1059 = vperm.xlu0 %1058, %v1056
      %v1060 = vpop.permute.xlu0 %1059
      %v1062 = vperm.slane %v1027, 2
      %v1063 = vperm.slane %v1028, 2
      %v1064 = vmul.f32 %v1060, %v1062
      %v1065 = vmul.f32 %v1060, %v1063
      %v1066 = vadd.f32 %v1053, %v1064
      %v1067 = vadd.f32 %v1054, %v1065
      %1068 = vrot.lane.b32.xlu0 %v793, 113
      %v1069 = vpop.permute.xlu0 %1068
      %1070 = vrot.lane.b32.xlu0 %v794, 113
      %v1071 = vpop.permute.xlu0 %1070
      %v1072 = vsel %vm620, %v1069, %v1071
      %v1073 = vsel %vm620, %v1071, %v1069
      %v1074 = vmul.f32 %v1072, %v624
      %v1075 = vmul.f32 %v1073, %v625
      %s1076 = scalar_lea.vmem %s4, 72
      %v1077 = vld [vmem:[%s1076] sm:$0x7]
      %1079 = vset.pattern.permute.xlu0 0
      %1080 = vperm.xlu0 %1079, %v1077
      %v1081 = vpop.permute.xlu0 %1080
      %v1083 = vperm.slane %v1074, 0
      %v1084 = vperm.slane %v1075, 0
      %v1085 = vmul.f32 %v1081, %v1083
      %v1086 = vmul.f32 %v1081, %v1084
      %v1087 = vadd.f32 %v1066, %v1085
      %v1088 = vadd.f32 %v1067, %v1086
      %s1089 = scalar_lea.vmem %s4, 76
      %v1090 = vld [vmem:[%s1089] sm:$0x7]
      %1092 = vset.pattern.permute.xlu0 0
      %1093 = vperm.xlu0 %1092, %v1090
      %v1094 = vpop.permute.xlu0 %1093
      %v1096 = vperm.slane %v1074, 1
      %v1097 = vperm.slane %v1075, 1
      %v1098 = vmul.f32 %v1094, %v1096
      %v1099 = vmul.f32 %v1094, %v1097
      %v1100 = vadd.f32 %v1087, %v1098
      %v1101 = vadd.f32 %v1088, %v1099
      %s1102 = scalar_lea.vmem %s4, 80
      %v1103 = vld [vmem:[%s1102] sm:$0x7]
      %1105 = vset.pattern.permute.xlu0 0
      %1106 = vperm.xlu0 %1105, %v1103
      %v1107 = vpop.permute.xlu0 %1106
      %v1109 = vperm.slane %v1074, 2
      %v1110 = vperm.slane %v1075, 2
      %v1111 = vmul.f32 %v1107, %v1109
      %v1112 = vmul.f32 %v1107, %v1110
      %v1113 = vadd.f32 %v1100, %v1111
      %v1114 = vadd.f32 %v1101, %v1112
      %1115 = vrot.lane.b32.xlu0 %v793, 112
      %v1116 = vpop.permute.xlu0 %1115
      %1117 = vrot.lane.b32.xlu0 %v794, 112
      %v1118 = vpop.permute.xlu0 %1117
      %v1119 = vsel %vm678, %v1116, %v1118
      %v1120 = vsel %vm678, %v1118, %v1116
      %v1121 = vmul.f32 %v1119, %v682
      %v1122 = vmul.f32 %v1120, %v683
      %s1123 = scalar_lea.vmem %s4, 84
      %v1124 = vld [vmem:[%s1123] sm:$0x7]
      %1126 = vset.pattern.permute.xlu0 0
      %1127 = vperm.xlu0 %1126, %v1124
      %v1128 = vpop.permute.xlu0 %1127
      %v1130 = vperm.slane %v1121, 0
      %v1131 = vperm.slane %v1122, 0
      %v1132 = vmul.f32 %v1128, %v1130
      %v1133 = vmul.f32 %v1128, %v1131
      %v1134 = vadd.f32 %v1113, %v1132
      %v1135 = vadd.f32 %v1114, %v1133
      %s1136 = scalar_lea.vmem %s4, 88
      %v1137 = vld [vmem:[%s1136] sm:$0x7]
      %1139 = vset.pattern.permute.xlu0 0
      %1140 = vperm.xlu0 %1139, %v1137
      %v1141 = vpop.permute.xlu0 %1140
      %v1143 = vperm.slane %v1121, 1
      %v1144 = vperm.slane %v1122, 1
      %v1145 = vmul.f32 %v1141, %v1143
      %v1146 = vmul.f32 %v1141, %v1144
      %v1147 = vadd.f32 %v1134, %v1145
      %v1148 = vadd.f32 %v1135, %v1146
      %s1149 = scalar_lea.vmem %s4, 92
      %v1150 = vld [vmem:[%s1149] sm:$0x7]
      %1152 = vset.pattern.permute.xlu0 0
      %1153 = vperm.xlu0 %1152, %v1150
      %v1154 = vpop.permute.xlu0 %1153
      %v1156 = vperm.slane %v1121, 2
      %v1157 = vperm.slane %v1122, 2
      %v1158 = vmul.f32 %v1154, %v1156
      %v1159 = vmul.f32 %v1154, %v1157
      %v1160 = vadd.f32 %v1147, %v1158
      %v1161 = vadd.f32 %v1148, %v1159
      %1162 = vrot.lane.b32.xlu0 %v793, 111
      %v1163 = vpop.permute.xlu0 %1162
      %1164 = vrot.lane.b32.xlu0 %v794, 111
      %v1165 = vpop.permute.xlu0 %1164
      %v1166 = vsel %vm736, %v1163, %v1165
      %v1167 = vsel %vm736, %v1165, %v1163
      %v1168 = vmul.f32 %v1166, %v740
      %v1169 = vmul.f32 %v1167, %v741
      %s1170 = scalar_lea.vmem %s4, 96
      %v1171 = vld [vmem:[%s1170] sm:$0x7]
      %1173 = vset.pattern.permute.xlu0 0
      %1174 = vperm.xlu0 %1173, %v1171
      %v1175 = vpop.permute.xlu0 %1174
      %v1177 = vperm.slane %v1168, 0
      %v1178 = vperm.slane %v1169, 0
      %v1179 = vmul.f32 %v1175, %v1177
      %v1180 = vmul.f32 %v1175, %v1178
      %v1181 = vadd.f32 %v1160, %v1179
      %v1182 = vadd.f32 %v1161, %v1180
      %s1183 = scalar_lea.vmem %s4, 100
      %v1184 = vld [vmem:[%s1183] sm:$0x7]
      %1186 = vset.pattern.permute.xlu0 0
      %1187 = vperm.xlu0 %1186, %v1184
      %v1188 = vpop.permute.xlu0 %1187
      %v1190 = vperm.slane %v1168, 1
      %v1191 = vperm.slane %v1169, 1
      %v1192 = vmul.f32 %v1188, %v1190
      %v1193 = vmul.f32 %v1188, %v1191
      %v1194 = vadd.f32 %v1181, %v1192
      %v1195 = vadd.f32 %v1182, %v1193
      %s1196 = scalar_lea.vmem %s4, 104
      %v1197 = vld [vmem:[%s1196] sm:$0x7]
      %1199 = vset.pattern.permute.xlu0 0
      %1200 = vperm.xlu0 %1199, %v1197
      %v1201 = vpop.permute.xlu0 %1200
      %v1203 = vperm.slane %v1168, 2
      %v1204 = vperm.slane %v1169, 2
      %v1205 = vmul.f32 %v1201, %v1203
      %v1206 = vmul.f32 %v1201, %v1204
      %v1207 = vadd.f32 %v1194, %v1205
      %v1208 = vadd.f32 %v1195, %v1206
      %v1209 = vld [vmem:[%s5] sm:$0x7]
      %1211 = vset.pattern.permute.xlu0 0
      %1212 = vperm.xlu0 %1211, %v1209
      %v1213 = vpop.permute.xlu0 %1212
      %v1215 = vadd.f32 %v1207, %v1213
      %v1216 = vadd.f32 %v1208, %v1213
      %v1217 = vmax.f32 %v1215, 0.0
      %v1218 = vmax.f32 %v1216, 0.0
      %1219 = vst [vmem:[#allocation1] ss:$2 sm:$0xff] %v252
      %v1220 = vld.sshfl [vmem:[#allocation1] sm:$0xff pattern:$0x75316420]
      %v1221 = vld.sshfl [vmem:[#allocation1 + $0x8] sm:$0xff pattern:$0x75316420]
      %v1224 = vadd.f32 %v1217, %v1220
      %v1225 = vadd.f32 %v1218, %v1221
      %v1228 = vrot.slane %v1225, 4
      %vm1229 = vcmask 1043456
      %v1230 = vsel %vm1229, %v1224, %v1228
      %1232 = vst [vmem:[%s251] sm:$0x77] %v1230
      %p1233 = scmp.lt.s32.totalorder %s17, 1
      %s1234 = scalar_select %p1233, %s17, 1
      %s1235 = smul.addr %s1234, 2
      %s1236 = smul.addr %s1235, 4
      %s1237 = scalar_lea.vmem %s6, %s1236
      // Predicated region
      $region45: #{simple_residual_block.1} parent=43 // pred_check
        %p1238 = pneg %p166
      $region46: #{simple_residual_block.1} parent=43 // pred_check_branch
        %1240 = sbr.rel (%p1238) target = $region48
      $region47: #{simple_residual_block.1} parent=43 // pred_region
        _
      $region48: #{simple_residual_block.1} parent=43 // pred_fallthru
        _
    $region44: #{simple_residual_block.1} parent=5 // pred_fallthru
      _
    %p1241 = scmp.le.s32.totalorder 2, %s12
    // Predicated region
    $region49: #{simple_residual_block.1} parent=5 // pred_check
      %p1242 = pneg %p1241
    $region50: #{simple_residual_block.1} parent=5 // pred_check_branch
      %1244 = sbr.rel (%p1242) target = $region52
    $region51: #{simple_residual_block.1} parent=5 // pred_region
      %s1245 = ssub.s32 %s12, 2
      // Predicated region
      $region53: #{simple_residual_block.1} parent=51 // pred_check
        %p1246 = pneg %p172
      $region54: #{simple_residual_block.1} parent=51 // pred_check_branch
        %1248 = sbr.rel (%p1246) target = $region56
      $region55: #{simple_residual_block.1} parent=51 // pred_region
        %p1249 = scmp.lt.s32.totalorder %s18, 1
        %s1250 = scalar_select %p1249, %s18, 1
        %s1251 = smul.addr %s1250, 2
        %s1252 = smul.addr %s1251, 4
        %s1253 = scalar_lea.vmem %s6, %s1252
      $region56: #{simple_residual_block.1} parent=51 // pred_fallthru
        _
    $region52: #{simple_residual_block.1} parent=5 // pred_fallthru
      _
  $region6: #{simple_residual_block.1} parent=0 // loop_footer
    %s16 = sadd.s32 1, %s12
  $region7: #{simple_residual_block.1} parent=0 // loop_footer_branch
    %11 = sbr.rel target = $region3
  $region8: #{simple_residual_block.1} parent=0 // loop_exit
    _

</llo_original>
